<compile_context>
chip_gen: v6e
topology: v6e:2x2x1
jax: 0.10.0
libtpu: 0.0.40
codegen_flags: <defaults>
</compile_context>

<pallas_src>
import functools

import jax
import jax.numpy as jnp
from jax import lax
from jax.experimental import pallas as pl
from jax.experimental.pallas import tpu as pltpu

_LANE = 128
_SUBLANE = 8

# MXU-native dtype for weights and matmul inputs; accumulation stays f32 via
# preferred_element_type.  Elementwise work stays f32 (v5e VPU has no bf16).
_MXU_DTYPE = jnp.bfloat16

# Fully unroll the shared inter-block repeat loop up to this trip count so the
# LLO scheduler can interleave consecutive blocks' matmuls/elementwise work.
_MAX_UNROLL = 8


def _rup(x, m):
    return ((x + m - 1) // m) * m


def _pad2(a, rows, cols, dtype):
    a = jnp.asarray(a, jnp.float32)
    return jnp.pad(a, ((0, rows - a.shape[0]),
                       (0, cols - a.shape[1]))).astype(dtype)


# ----------------------------------------------------------------------------
# Fused Pallas kernel
# ----------------------------------------------------------------------------
def _apply_block(x, vals, has_skip, act):
    """One StoResBlock (noise_dim = 0) on values already resident in VMEM.

    Weights are bf16 (MXU dtype), biases pre-broadcast f32, accumulation f32.
    """
    if has_skip:
        w1, b1, w2, b2, w3, b3 = vals
    else:
        w1, b1, w2, b2 = vals

    x_mm = x.astype(w1.dtype)                     # bf16 matmul input (small)
    h = jnp.dot(x_mm, w1, preferred_element_type=jnp.float32) + b1
    h = jnp.maximum(h, 0.0)

    out = jnp.dot(h.astype(w2.dtype), w2,
                  preferred_element_type=jnp.float32) + b2

    if has_skip:
        out = out + (jnp.dot(x_mm, w3, preferred_element_type=jnp.float32) + b3)
    else:
        out = out + x.astype(jnp.float32)

    if act == "relu":
        out = jnp.maximum(out, 0.0)
    elif act == "sigmoid":
        out = jax.nn.sigmoid(out)
    return out


def _fused_resmlp_kernel(x_ref, *refs, stage_meta):
    """Entire ResMLP stack for one batch tile; activations never leave VMEM.

    stage_meta: tuple of (has_skip_proj, out_act, repeat_count) per stage.
    refs = (per-stage weights/biases ..., o_ref)
    """
    o_ref = refs[-1]
    wrefs = refs[:-1]

    h = x_ref[...]
    rows = h.shape[0]
    idx = 0
    for has_skip, act, repeat in stage_meta:
        n = 6 if has_skip else 4
        # Hoist weight/bias loads once per stage (outside any repeat loop).
        raw = [r[...] for r in wrefs[idx:idx + n]]
        idx += n
        # Hoist the (1, d) -> (rows, d) bias broadcasts out of the repeat loop
        # (JAX does not CSE broadcast_in_dim inside loops).
        for bi in (1, 3, 5):
            if bi < n:
                raw[bi] = jnp.broadcast_to(raw[bi], (rows, raw[bi].shape[-1]))
        vals = tuple(raw)

        if repeat <= _MAX_UNROLL:
            for _ in range(repeat):               # fully unrolled short loop
                h = _apply_block(h, vals, has_skip, act)
        else:
            def body(_, hh, _v=vals, _s=has_skip, _a=act):
                return _apply_block(hh, _v, _s, _a)
            h = lax.fori_loop(0, repeat, body, h.astype(jnp.float32), unroll=2)

    o_ref[...] = h.astype(o_ref.dtype)


# ----------------------------------------------------------------------------
# Wrapper: padding, batch grid, VMEM sizing
# ----------------------------------------------------------------------------
def _vmem_capacity_bytes():
    """Per-core VMEM capacity; conservative (v7x-sized) fallback."""
    try:
        return int(pltpu.get_tpu_info().vmem_capacity_bytes)
    except Exception:
        return 64 << 20


def _per_row_bytes(in_pad, max_pad, out_pad):
    # bf16 x tile (x2 double-buffered) + f32 out tile (x2 double-buffered)
    # + ~3 live f32 activation buffers + ~3 hoisted f32 bias broadcasts
    # + bf16 matmul-input casts.
    return 4 * in_pad + 8 * out_pad + 28 * max_pad


def _choose_batch_tile(batch, in_pad, max_pad, out_pad, resident_weight_bytes,
                       budget_bytes):
    """Largest batch tile (multiple of 8) whose working set fits the budget."""
    per_row = _per_row_bytes(in_pad, max_pad, out_pad)
    batch8 = max(_SUBLANE, _rup(batch, _SUBLANE))
    # Keep >= 2 grid steps whenever there are >= 16 rows so v7x's two
    # TensorCores both get work under dimension_semantics=("parallel",);
    # costs only one extra ~0.35us grid step on single-TC chips.
    cap = batch8 if batch8 < 2 * _SUBLANE else _rup(batch8 // 2, _SUBLANE)
    for tb in (4096, 2048, 1024, 512, 256, 128, 64, 32, 16, 8):
        if tb > cap:
            continue
        if resident_weight_bytes + tb * per_row <= budget_bytes:
            return tb
    return _SUBLANE


def resmlp_forward(params, x):
    """Full ResMLP forward in a single pallas_call (batch-gridded)."""
    num_blocks = params["num_blocks"]
    out_act = params["out_act"]

    # Stage list: (block params, activation, repeat count)
    if num_blocks == 1:
        stages = [(params["net"], out_act, 1)]
    else:
        stages = [(params["input"], "relu", 1)]
        if num_blocks > 2:
            stages.append((params["inter"], "relu", num_blocks - 2))
        stages.append((params["out"], out_act, 1))

    batch, in_dim = x.shape
    out_dim = stages[-1][0]["w2"].shape[1]
    in_pad = _rup(in_dim, _LANE)
    out_pad = _rup(out_dim, _LANE)

    # Flatten + zero-pad all stage parameters to lane-aligned shapes.
    # Weights are cast to bf16 here (once), biases stay f32.
    flat_args = []
    stage_meta = []
    max_pad = max(in_pad, out_pad)
    for p, act, repeat in stages:
        d_in = _rup(p["w1"].shape[0], _LANE)
        d_hid = _rup(p["w1"].shape[1], _LANE)
        d_out = _rup(p["w2"].shape[1], _LANE)
        max_pad = max(max_pad, d_hid, d_out)
        has_skip = "w3" in p
        flat_args += [_pad2(p["w1"], d_in, d_hid, _MXU_DTYPE),
                      _pad2(p["b1"], 1, d_hid, jnp.float32),
                      _pad2(p["w2"], d_hid, d_out, _MXU_DTYPE),
                      _pad2(p["b2"], 1, d_out, jnp.float32)]
        if has_skip:
            flat_args += [_pad2(p["w3"], d_in, d_out, _MXU_DTYPE),
                          _pad2(p["b3"], 1, d_out, jnp.float32)]
        stage_meta.append((has_skip, act, repeat))

    weight_bytes = sum(int(a.size) * a.dtype.itemsize for a in flat_args)
    capacity = _vmem_capacity_bytes()
    budget = int(capacity * 0.6)

    kernel = functools.partial(_fused_resmlp_kernel,
                               stage_meta=tuple(stage_meta))

    def build_and_run(single_buffer_weights):
        wbuf = 1 if single_buffer_weights else 2
        tb = _choose_batch_tile(batch, in_pad, max_pad, out_pad,
                                wbuf * weight_bytes, budget)
        batch_pad = _rup(batch, tb)
        x_pad = jnp.pad(jnp.asarray(x, jnp.float32),
                        ((0, batch_pad - batch), (0, in_pad - in_dim))
                        ).astype(_MXU_DTYPE)

        in_specs = [pl.BlockSpec((tb, in_pad), lambda i: (i, 0))]
        # Weights/biases: constant index_map -> resident across batch tiles;
        # single-buffered so they don't pay 2x VMEM for nothing.
        wkw = ({"pipeline_mode": pl.Buffered(1)}
               if single_buffer_weights else {})
        in_specs += [pl.BlockSpec(a.shape, lambda i: (0, 0), **wkw)
                     for a in flat_args]
        out_specs = pl.BlockSpec((tb, out_pad), lambda i: (i, 0))

        vmem_needed = (wbuf * weight_bytes
                       + tb * _per_row_bytes(in_pad, max_pad, out_pad)
                       + (1 << 20))
        vmem_limit = max(32 << 20, int(vmem_needed * 1.25))
        if vmem_limit > capacity:
            # TODO(synk): stream weights from HBM (memory_space=pl.ANY +
            # emit_pipeline over the hidden dim) for models whose weights
            # outgrow VMEM; meanwhile never clamp the limit below the need.
            vmem_limit = max(capacity, int(vmem_needed * 1.05))

        out = pl.pallas_call(
            kernel,
            out_shape=jax.ShapeDtypeStruct((batch_pad, out_pad), jnp.float32),
            grid=(pl.cdiv(batch_pad, tb),),
            in_specs=in_specs,
            out_specs=out_specs,
            compiler_params=pltpu.CompilerParams(
                dimension_semantics=("parallel",),   # megacore split on v7x
                vmem_limit_bytes=int(vmem_limit)),
        )(x_pad, *flat_args)
        return out[:batch, :out_dim]

    try:
        return build_and_run(True)
    except Exception:
        # Fallback for jax builds without BlockSpec(pipeline_mode=...).
        return build_and_run(False)


# ----------------------------------------------------------------------------
# Parameter construction (deterministic, synthetic — no checkpoint loading)
# ----------------------------------------------------------------------------
def _init_linear(key, in_dim, out_dim):
    # PyTorch nn.Linear default init: U(-1/sqrt(in), 1/sqrt(in)) for W and b.
    kw, kb = jax.random.split(key)
    bound = 1.0 / jnp.sqrt(jnp.float32(in_dim))
    w = jax.random.uniform(kw, (in_dim, out_dim), jnp.float32, -bound, bound)
    b = jax.random.uniform(kb, (1, out_dim), jnp.float32, -bound, bound)
    return w, b


def init_storesblock(key, dim, hidden_dim, out_dim):
    k1, k2, k3 = jax.random.split(key, 3)
    p = {}
    p["w1"], p["b1"] = _init_linear(k1, dim, hidden_dim)
    p["w2"], p["b2"] = _init_linear(k2, hidden_dim, out_dim)
    if out_dim != dim:
        p["w3"], p["b3"] = _init_linear(k3, dim, out_dim)
    return p


def init_resmlp(key, in_dim, out_dim, num_layer, hidden_dim, sigmoid=False):
    # TODO(synk): BatchNorm1d path (add_bn=True) not implemented (default False).
    if num_layer % 2 != 0:
        num_layer += 1
    num_blocks = num_layer // 2
    out_act = "sigmoid" if sigmoid else None
    ks = jax.random.split(key, 3)
    params = {"num_blocks": num_blocks, "out_act": out_act}
    if num_blocks == 1:
        params["net"] = init_storesblock(ks[0], in_dim, hidden_dim, out_dim)
    else:
        params["input"] = init_storesblock(ks[0], in_dim, hidden_dim, hidden_dim)
        # nn.Sequential(*[block] * (num_blocks - 2)) shares ONE block's weights
        params["inter"] = init_storesblock(ks[1], hidden_dim, hidden_dim, hidden_dim)
        params["out"] = init_storesblock(ks[2], hidden_dim, hidden_dim, out_dim)
    return params


# ----------------------------------------------------------------------------
if __name__ == "__main__":
    key = jax.random.PRNGKey(0)
    k_param, k_x = jax.random.split(key)

    # num_layer=8 -> 4 blocks -> the shared "inter" block repeats twice
    # (exercises the unrolled repeat path).
    batch, in_dim, out_dim, hidden_dim, num_layer = 8, 4, 2, 32, 8

    params = init_resmlp(k_param, in_dim=in_dim, out_dim=out_dim,
                         num_layer=num_layer, hidden_dim=hidden_dim,
                         sigmoid=False)

    x = jax.random.normal(k_x, (batch, in_dim), dtype=jnp.float32)

    y = resmlp_forward(params, x)
    y = jax.block_until_ready(y)
    assert y.shape == (batch, out_dim), y.shape

    # pure-JAX f32 reference check (bf16 MXU path => loosened tolerance)
    def ref_block(xx, p, act):
        h = jnp.maximum(xx @ p["w1"] + p["b1"], 0.0)
        o = h @ p["w2"] + p["b2"]
        o = o + (xx @ p["w3"] + p["b3"] if "w3" in p else xx)
        if act == "relu":
            o = jnp.maximum(o, 0.0)
        elif act == "sigmoid":
            o = jax.nn.sigmoid(o)
        return o

    h_ref = ref_block(x, params["input"], "relu")
    for _ in range(params["num_blocks"] - 2):
        h_ref = ref_block(h_ref, params["inter"], "relu")
    y_ref = ref_block(h_ref, params["out"], params["out_act"])
    assert jnp.allclose(y, y_ref, atol=3e-2, rtol=3e-2), (
        float(jnp.max(jnp.abs(y - y_ref))))

    print("KERNEL_OK")
</pallas_src>

<mosaic_0001>
module attributes {stable_mosaic.version = 11 : i64} {
  func.func @_fused_resmlp_kernel(%arg0: i32, %arg1: memref<8x128xbf16, #tpu.memory_space<vmem>>, %arg2: memref<128x128xbf16, #tpu.memory_space<vmem>>, %arg3: memref<1x128xf32, #tpu.memory_space<vmem>>, %arg4: memref<128x128xbf16, #tpu.memory_space<vmem>>, %arg5: memref<1x128xf32, #tpu.memory_space<vmem>>, %arg6: memref<128x128xbf16, #tpu.memory_space<vmem>>, %arg7: memref<1x128xf32, #tpu.memory_space<vmem>>, %arg8: memref<128x128xbf16, #tpu.memory_space<vmem>>, %arg9: memref<1x128xf32, #tpu.memory_space<vmem>>, %arg10: memref<128x128xbf16, #tpu.memory_space<vmem>>, %arg11: memref<1x128xf32, #tpu.memory_space<vmem>>, %arg12: memref<128x128xbf16, #tpu.memory_space<vmem>>, %arg13: memref<1x128xf32, #tpu.memory_space<vmem>>, %arg14: memref<128x128xbf16, #tpu.memory_space<vmem>>, %arg15: memref<1x128xf32, #tpu.memory_space<vmem>>, %arg16: memref<128x128xbf16, #tpu.memory_space<vmem>>, %arg17: memref<1x128xf32, #tpu.memory_space<vmem>>, %arg18: memref<8x128xf32, #tpu.memory_space<vmem>>) attributes {dimension_semantics = [#tpu.dimension_semantics<parallel>], iteration_bounds = array<i64: 1>, scalar_prefetch = 0 : i64, scratch_operands = 0 : i64, tpu.core_type = #tpu.core_type<tc>, window_params = [{transform_indices = @transform_0, window_bounds = array<i64: 8, 128>}, {pipeline_mode = #tpu.pipeline_mode<synchronous>, transform_indices = @transform_1, window_bounds = array<i64: 128, 128>}, {pipeline_mode = #tpu.pipeline_mode<synchronous>, transform_indices = @transform_2, window_bounds = array<i64: 1, 128>}, {pipeline_mode = #tpu.pipeline_mode<synchronous>, transform_indices = @transform_3, window_bounds = array<i64: 128, 128>}, {pipeline_mode = #tpu.pipeline_mode<synchronous>, transform_indices = @transform_4, window_bounds = array<i64: 1, 128>}, {pipeline_mode = #tpu.pipeline_mode<synchronous>, transform_indices = @transform_5, window_bounds = array<i64: 128, 128>}, {pipeline_mode = #tpu.pipeline_mode<synchronous>, transform_indices = @transform_6, window_bounds = array<i64: 1, 128>}, {pipeline_mode = #tpu.pipeline_mode<synchronous>, transform_indices = @transform_7, window_bounds = array<i64: 128, 128>}, {pipeline_mode = #tpu.pipeline_mode<synchronous>, transform_indices = @transform_8, window_bounds = array<i64: 1, 128>}, {pipeline_mode = #tpu.pipeline_mode<synchronous>, transform_indices = @transform_9, window_bounds = array<i64: 128, 128>}, {pipeline_mode = #tpu.pipeline_mode<synchronous>, transform_indices = @transform_10, window_bounds = array<i64: 1, 128>}, {pipeline_mode = #tpu.pipeline_mode<synchronous>, transform_indices = @transform_11, window_bounds = array<i64: 128, 128>}, {pipeline_mode = #tpu.pipeline_mode<synchronous>, transform_indices = @transform_12, window_bounds = array<i64: 1, 128>}, {pipeline_mode = #tpu.pipeline_mode<synchronous>, transform_indices = @transform_13, window_bounds = array<i64: 128, 128>}, {pipeline_mode = #tpu.pipeline_mode<synchronous>, transform_indices = @transform_14, window_bounds = array<i64: 1, 128>}, {pipeline_mode = #tpu.pipeline_mode<synchronous>, transform_indices = @transform_15, window_bounds = array<i64: 128, 128>}, {pipeline_mode = #tpu.pipeline_mode<synchronous>, transform_indices = @transform_16, window_bounds = array<i64: 1, 128>}, {transform_indices = @transform_17, window_bounds = array<i64: 8, 128>}]} {
    %c0 = arith.constant 0 : index
    %c0_0 = arith.constant 0 : index
    %0 = vector.load %arg1[%c0, %c0_0] : memref<8x128xbf16, #tpu.memory_space<vmem>>, vector<8x128xbf16>
    %c0_1 = arith.constant 0 : index
    %c0_2 = arith.constant 0 : index
    %1 = vector.load %arg2[%c0_1, %c0_2] : memref<128x128xbf16, #tpu.memory_space<vmem>>, vector<128x128xbf16>
    %c0_3 = arith.constant 0 : index
    %c0_4 = arith.constant 0 : index
    %2 = vector.load %arg3[%c0_3, %c0_4] : memref<1x128xf32, #tpu.memory_space<vmem>>, vector<1x128xf32>
    %c0_5 = arith.constant 0 : index
    %c0_6 = arith.constant 0 : index
    %3 = vector.load %arg4[%c0_5, %c0_6] : memref<128x128xbf16, #tpu.memory_space<vmem>>, vector<128x128xbf16>
    %c0_7 = arith.constant 0 : index
    %c0_8 = arith.constant 0 : index
    %4 = vector.load %arg5[%c0_7, %c0_8] : memref<1x128xf32, #tpu.memory_space<vmem>>, vector<1x128xf32>
    %c0_9 = arith.constant 0 : index
    %c0_10 = arith.constant 0 : index
    %5 = vector.load %arg6[%c0_9, %c0_10] : memref<128x128xbf16, #tpu.memory_space<vmem>>, vector<128x128xbf16>
    %c0_11 = arith.constant 0 : index
    %c0_12 = arith.constant 0 : index
    %6 = vector.load %arg7[%c0_11, %c0_12] : memref<1x128xf32, #tpu.memory_space<vmem>>, vector<1x128xf32>
    %7 = vector.shape_cast %2 : vector<1x128xf32> to vector<1x128xf32>
    %8 = vector.broadcast %7 : vector<1x128xf32> to vector<8x128xf32>
    %9 = vector.shape_cast %4 : vector<1x128xf32> to vector<1x128xf32>
    %10 = vector.broadcast %9 : vector<1x128xf32> to vector<8x128xf32>
    %11 = vector.shape_cast %6 : vector<1x128xf32> to vector<1x128xf32>
    %12 = vector.broadcast %11 : vector<1x128xf32> to vector<8x128xf32>
    %cst = arith.constant dense<0.000000e+00> : vector<8x128xf32>
    %13 = tpu.matmul %0, %1, %cst {dimension_numbers = #tpu.dot_dimension_numbers<[1], [0], [0], [1], [0, 0, 1, 1], [], []>} : vector<8x128xbf16>, vector<128x128xbf16>, vector<8x128xf32> -> vector<8x128xf32>
    %14 = arith.addf %13, %8 : vector<8x128xf32>
    %cst_13 = arith.constant 0.000000e+00 : f32
    %15 = vector.broadcast %cst_13 : f32 to vector<8x128xf32>
    %16 = arith.maximumf %14, %15 : vector<8x128xf32>
    %17 = arith.truncf %16 : vector<8x128xf32> to vector<8x128xbf16>
    %cst_14 = arith.constant dense<0.000000e+00> : vector<8x128xf32>
    %18 = tpu.matmul %17, %3, %cst_14 {dimension_numbers = #tpu.dot_dimension_numbers<[1], [0], [0], [1], [0, 0, 1, 1], [], []>} : vector<8x128xbf16>, vector<128x128xbf16>, vector<8x128xf32> -> vector<8x128xf32>
    %19 = arith.addf %18, %10 : vector<8x128xf32>
    %cst_15 = arith.constant dense<0.000000e+00> : vector<8x128xf32>
    %20 = tpu.matmul %0, %5, %cst_15 {dimension_numbers = #tpu.dot_dimension_numbers<[1], [0], [0], [1], [0, 0, 1, 1], [], []>} : vector<8x128xbf16>, vector<128x128xbf16>, vector<8x128xf32> -> vector<8x128xf32>
    %21 = arith.addf %20, %12 : vector<8x128xf32>
    %22 = arith.addf %19, %21 : vector<8x128xf32>
    %cst_16 = arith.constant 0.000000e+00 : f32
    %23 = vector.broadcast %cst_16 : f32 to vector<8x128xf32>
    %24 = arith.maximumf %22, %23 : vector<8x128xf32>
    %c0_17 = arith.constant 0 : index
    %c0_18 = arith.constant 0 : index
    %25 = vector.load %arg8[%c0_17, %c0_18] : memref<128x128xbf16, #tpu.memory_space<vmem>>, vector<128x128xbf16>
    %c0_19 = arith.constant 0 : index
    %c0_20 = arith.constant 0 : index
    %26 = vector.load %arg9[%c0_19, %c0_20] : memref<1x128xf32, #tpu.memory_space<vmem>>, vector<1x128xf32>
    %c0_21 = arith.constant 0 : index
    %c0_22 = arith.constant 0 : index
    %27 = vector.load %arg10[%c0_21, %c0_22] : memref<128x128xbf16, #tpu.memory_space<vmem>>, vector<128x128xbf16>
    %c0_23 = arith.constant 0 : index
    %c0_24 = arith.constant 0 : index
    %28 = vector.load %arg11[%c0_23, %c0_24] : memref<1x128xf32, #tpu.memory_space<vmem>>, vector<1x128xf32>
    %29 = vector.shape_cast %26 : vector<1x128xf32> to vector<1x128xf32>
    %30 = vector.broadcast %29 : vector<1x128xf32> to vector<8x128xf32>
    %31 = vector.shape_cast %28 : vector<1x128xf32> to vector<1x128xf32>
    %32 = vector.broadcast %31 : vector<1x128xf32> to vector<8x128xf32>
    %33 = arith.truncf %24 : vector<8x128xf32> to vector<8x128xbf16>
    %cst_25 = arith.constant dense<0.000000e+00> : vector<8x128xf32>
    %34 = tpu.matmul %33, %25, %cst_25 {dimension_numbers = #tpu.dot_dimension_numbers<[1], [0], [0], [1], [0, 0, 1, 1], [], []>} : vector<8x128xbf16>, vector<128x128xbf16>, vector<8x128xf32> -> vector<8x128xf32>
    %35 = arith.addf %34, %30 : vector<8x128xf32>
    %cst_26 = arith.constant 0.000000e+00 : f32
    %36 = vector.broadcast %cst_26 : f32 to vector<8x128xf32>
    %37 = arith.maximumf %35, %36 : vector<8x128xf32>
    %38 = arith.truncf %37 : vector<8x128xf32> to vector<8x128xbf16>
    %cst_27 = arith.constant dense<0.000000e+00> : vector<8x128xf32>
    %39 = tpu.matmul %38, %27, %cst_27 {dimension_numbers = #tpu.dot_dimension_numbers<[1], [0], [0], [1], [0, 0, 1, 1], [], []>} : vector<8x128xbf16>, vector<128x128xbf16>, vector<8x128xf32> -> vector<8x128xf32>
    %40 = arith.addf %39, %32 : vector<8x128xf32>
    %41 = arith.addf %40, %24 : vector<8x128xf32>
    %cst_28 = arith.constant 0.000000e+00 : f32
    %42 = vector.broadcast %cst_28 : f32 to vector<8x128xf32>
    %43 = arith.maximumf %41, %42 : vector<8x128xf32>
    %44 = arith.truncf %43 : vector<8x128xf32> to vector<8x128xbf16>
    %cst_29 = arith.constant dense<0.000000e+00> : vector<8x128xf32>
    %45 = tpu.matmul %44, %25, %cst_29 {dimension_numbers = #tpu.dot_dimension_numbers<[1], [0], [0], [1], [0, 0, 1, 1], [], []>} : vector<8x128xbf16>, vector<128x128xbf16>, vector<8x128xf32> -> vector<8x128xf32>
    %46 = arith.addf %45, %30 : vector<8x128xf32>
    %cst_30 = arith.constant 0.000000e+00 : f32
    %47 = vector.broadcast %cst_30 : f32 to vector<8x128xf32>
    %48 = arith.maximumf %46, %47 : vector<8x128xf32>
    %49 = arith.truncf %48 : vector<8x128xf32> to vector<8x128xbf16>
    %cst_31 = arith.constant dense<0.000000e+00> : vector<8x128xf32>
    %50 = tpu.matmul %49, %27, %cst_31 {dimension_numbers = #tpu.dot_dimension_numbers<[1], [0], [0], [1], [0, 0, 1, 1], [], []>} : vector<8x128xbf16>, vector<128x128xbf16>, vector<8x128xf32> -> vector<8x128xf32>
    %51 = arith.addf %50, %32 : vector<8x128xf32>
    %52 = arith.addf %51, %43 : vector<8x128xf32>
    %cst_32 = arith.constant 0.000000e+00 : f32
    %53 = vector.broadcast %cst_32 : f32 to vector<8x128xf32>
    %54 = arith.maximumf %52, %53 : vector<8x128xf32>
    %c0_33 = arith.constant 0 : index
    %c0_34 = arith.constant 0 : index
    %55 = vector.load %arg12[%c0_33, %c0_34] : memref<128x128xbf16, #tpu.memory_space<vmem>>, vector<128x128xbf16>
    %c0_35 = arith.constant 0 : index
    %c0_36 = arith.constant 0 : index
    %56 = vector.load %arg13[%c0_35, %c0_36] : memref<1x128xf32, #tpu.memory_space<vmem>>, vector<1x128xf32>
    %c0_37 = arith.constant 0 : index
    %c0_38 = arith.constant 0 : index
    %57 = vector.load %arg14[%c0_37, %c0_38] : memref<128x128xbf16, #tpu.memory_space<vmem>>, vector<128x128xbf16>
    %c0_39 = arith.constant 0 : index
    %c0_40 = arith.constant 0 : index
    %58 = vector.load %arg15[%c0_39, %c0_40] : memref<1x128xf32, #tpu.memory_space<vmem>>, vector<1x128xf32>
    %c0_41 = arith.constant 0 : index
    %c0_42 = arith.constant 0 : index
    %59 = vector.load %arg16[%c0_41, %c0_42] : memref<128x128xbf16, #tpu.memory_space<vmem>>, vector<128x128xbf16>
    %c0_43 = arith.constant 0 : index
    %c0_44 = arith.constant 0 : index
    %60 = vector.load %arg17[%c0_43, %c0_44] : memref<1x128xf32, #tpu.memory_space<vmem>>, vector<1x128xf32>
    %61 = vector.shape_cast %56 : vector<1x128xf32> to vector<1x128xf32>
    %62 = vector.broadcast %61 : vector<1x128xf32> to vector<8x128xf32>
    %63 = vector.shape_cast %58 : vector<1x128xf32> to vector<1x128xf32>
    %64 = vector.broadcast %63 : vector<1x128xf32> to vector<8x128xf32>
    %65 = vector.shape_cast %60 : vector<1x128xf32> to vector<1x128xf32>
    %66 = vector.broadcast %65 : vector<1x128xf32> to vector<8x128xf32>
    %67 = arith.truncf %54 : vector<8x128xf32> to vector<8x128xbf16>
    %cst_45 = arith.constant dense<0.000000e+00> : vector<8x128xf32>
    %68 = tpu.matmul %67, %55, %cst_45 {dimension_numbers = #tpu.dot_dimension_numbers<[1], [0], [0], [1], [0, 0, 1, 1], [], []>} : vector<8x128xbf16>, vector<128x128xbf16>, vector<8x128xf32> -> vector<8x128xf32>
    %69 = arith.addf %68, %62 : vector<8x128xf32>
    %cst_46 = arith.constant 0.000000e+00 : f32
    %70 = vector.broadcast %cst_46 : f32 to vector<8x128xf32>
    %71 = arith.maximumf %69, %70 : vector<8x128xf32>
    %72 = arith.truncf %71 : vector<8x128xf32> to vector<8x128xbf16>
    %cst_47 = arith.constant dense<0.000000e+00> : vector<8x128xf32>
    %73 = tpu.matmul %72, %57, %cst_47 {dimension_numbers = #tpu.dot_dimension_numbers<[1], [0], [0], [1], [0, 0, 1, 1], [], []>} : vector<8x128xbf16>, vector<128x128xbf16>, vector<8x128xf32> -> vector<8x128xf32>
    %74 = arith.addf %73, %64 : vector<8x128xf32>
    %cst_48 = arith.constant dense<0.000000e+00> : vector<8x128xf32>
    %75 = tpu.matmul %67, %59, %cst_48 {dimension_numbers = #tpu.dot_dimension_numbers<[1], [0], [0], [1], [0, 0, 1, 1], [], []>} : vector<8x128xbf16>, vector<128x128xbf16>, vector<8x128xf32> -> vector<8x128xf32>
    %76 = arith.addf %75, %66 : vector<8x128xf32>
    %77 = arith.addf %74, %76 : vector<8x128xf32>
    %c0_49 = arith.constant 0 : index
    %c0_50 = arith.constant 0 : index
    %78 = vector.load %arg18[%c0_49, %c0_50] : memref<8x128xf32, #tpu.memory_space<vmem>>, vector<8x128xf32>
    tpu.vector_store %arg18[%c0_49, %c0_50], %77 {strides = array<i32>} : memref<8x128xf32, #tpu.memory_space<vmem>>, vector<8x128xf32>,
    return
  }
  func.func @transform_0(%arg0: i32) -> (i32, i32) {
    %c0_i32 = arith.constant 0 : i32
    %c0_i32_0 = arith.constant 0 : i32
    return %arg0, %c0_i32 : i32, i32
  }
  func.func @transform_1(%arg0: i32) -> (i32, i32) {
    %c0_i32 = arith.constant 0 : i32
    %c0_i32_0 = arith.constant 0 : i32
    %c0_i32_1 = arith.constant 0 : i32
    return %c0_i32, %c0_i32_0 : i32, i32
  }
  func.func @transform_2(%arg0: i32) -> (i32, i32) {
    %c0_i32 = arith.constant 0 : i32
    %c0_i32_0 = arith.constant 0 : i32
    %c0_i32_1 = arith.constant 0 : i32
    return %c0_i32, %c0_i32_0 : i32, i32
  }
  func.func @transform_3(%arg0: i32) -> (i32, i32) {
    %c0_i32 = arith.constant 0 : i32
    %c0_i32_0 = arith.constant 0 : i32
    %c0_i32_1 = arith.constant 0 : i32
    return %c0_i32, %c0_i32_0 : i32, i32
  }
  func.func @transform_4(%arg0: i32) -> (i32, i32) {
    %c0_i32 = arith.constant 0 : i32
    %c0_i32_0 = arith.constant 0 : i32
    %c0_i32_1 = arith.constant 0 : i32
    return %c0_i32, %c0_i32_0 : i32, i32
  }
  func.func @transform_5(%arg0: i32) -> (i32, i32) {
    %c0_i32 = arith.constant 0 : i32
    %c0_i32_0 = arith.constant 0 : i32
    %c0_i32_1 = arith.constant 0 : i32
    return %c0_i32, %c0_i32_0 : i32, i32
  }
  func.func @transform_6(%arg0: i32) -> (i32, i32) {
    %c0_i32 = arith.constant 0 : i32
    %c0_i32_0 = arith.constant 0 : i32
    %c0_i32_1 = arith.constant 0 : i32
    return %c0_i32, %c0_i32_0 : i32, i32
  }
  func.func @transform_7(%arg0: i32) -> (i32, i32) {
    %c0_i32 = arith.constant 0 : i32
    %c0_i32_0 = arith.constant 0 : i32
    %c0_i32_1 = arith.constant 0 : i32
    return %c0_i32, %c0_i32_0 : i32, i32
  }
  func.func @transform_8(%arg0: i32) -> (i32, i32) {
    %c0_i32 = arith.constant 0 : i32
    %c0_i32_0 = arith.constant 0 : i32
    %c0_i32_1 = arith.constant 0 : i32
    return %c0_i32, %c0_i32_0 : i32, i32
  }
  func.func @transform_9(%arg0: i32) -> (i32, i32) {
    %c0_i32 = arith.constant 0 : i32
    %c0_i32_0 = arith.constant 0 : i32
    %c0_i32_1 = arith.constant 0 : i32
    return %c0_i32, %c0_i32_0 : i32, i32
  }
  func.func @transform_10(%arg0: i32) -> (i32, i32) {
    %c0_i32 = arith.constant 0 : i32
    %c0_i32_0 = arith.constant 0 : i32
    %c0_i32_1 = arith.constant 0 : i32
    return %c0_i32, %c0_i32_0 : i32, i32
  }
  func.func @transform_11(%arg0: i32) -> (i32, i32) {
    %c0_i32 = arith.constant 0 : i32
    %c0_i32_0 = arith.constant 0 : i32
    %c0_i32_1 = arith.constant 0 : i32
    return %c0_i32, %c0_i32_0 : i32, i32
  }
  func.func @transform_12(%arg0: i32) -> (i32, i32) {
    %c0_i32 = arith.constant 0 : i32
    %c0_i32_0 = arith.constant 0 : i32
    %c0_i32_1 = arith.constant 0 : i32
    return %c0_i32, %c0_i32_0 : i32, i32
  }
  func.func @transform_13(%arg0: i32) -> (i32, i32) {
    %c0_i32 = arith.constant 0 : i32
    %c0_i32_0 = arith.constant 0 : i32
    %c0_i32_1 = arith.constant 0 : i32
    return %c0_i32, %c0_i32_0 : i32, i32
  }
  func.func @transform_14(%arg0: i32) -> (i32, i32) {
    %c0_i32 = arith.constant 0 : i32
    %c0_i32_0 = arith.constant 0 : i32
    %c0_i32_1 = arith.constant 0 : i32
    return %c0_i32, %c0_i32_0 : i32, i32
  }
  func.func @transform_15(%arg0: i32) -> (i32, i32) {
    %c0_i32 = arith.constant 0 : i32
    %c0_i32_0 = arith.constant 0 : i32
    %c0_i32_1 = arith.constant 0 : i32
    return %c0_i32, %c0_i32_0 : i32, i32
  }
  func.func @transform_16(%arg0: i32) -> (i32, i32) {
    %c0_i32 = arith.constant 0 : i32
    %c0_i32_0 = arith.constant 0 : i32
    %c0_i32_1 = arith.constant 0 : i32
    return %c0_i32, %c0_i32_0 : i32, i32
  }
  func.func @transform_17(%arg0: i32) -> (i32, i32) {
    %c0_i32 = arith.constant 0 : i32
    %c0_i32_0 = arith.constant 0 : i32
    return %arg0, %c0_i32 : i32, i32
  }
}

module attributes {stable_mosaic.version = 11 : i64} {
  func.func @_fused_resmlp_kernel(%arg0: i32, %arg1: memref<8x128xbf16, #tpu.memory_space<vmem>>, %arg2: memref<128x128xbf16, #tpu.memory_space<vmem>>, %arg3: memref<1x128xf32, #tpu.memory_space<vmem>>, %arg4: memref<128x128xbf16, #tpu.memory_space<vmem>>, %arg5: memref<1x128xf32, #tpu.memory_space<vmem>>, %arg6: memref<128x128xbf16, #tpu.memory_space<vmem>>, %arg7: memref<1x128xf32, #tpu.memory_space<vmem>>, %arg8: memref<128x128xbf16, #tpu.memory_space<vmem>>, %arg9: memref<1x128xf32, #tpu.memory_space<vmem>>, %arg10: memref<128x128xbf16, #tpu.memory_space<vmem>>, %arg11: memref<1x128xf32, #tpu.memory_space<vmem>>, %arg12: memref<128x128xbf16, #tpu.memory_space<vmem>>, %arg13: memref<1x128xf32, #tpu.memory_space<vmem>>, %arg14: memref<128x128xbf16, #tpu.memory_space<vmem>>, %arg15: memref<1x128xf32, #tpu.memory_space<vmem>>, %arg16: memref<128x128xbf16, #tpu.memory_space<vmem>>, %arg17: memref<1x128xf32, #tpu.memory_space<vmem>>, %arg18: memref<8x128xf32, #tpu.memory_space<vmem>>) attributes {dimension_semantics = [#tpu.dimension_semantics<parallel>], iteration_bounds = array<i64: 1>, scalar_prefetch = 0 : i64, scratch_operands = 0 : i64, tpu.core_type = #tpu.core_type<tc>, window_params = [{transform_indices = @transform_0, window_bounds = array<i64: 8, 128>}, {pipeline_mode = #tpu.pipeline_mode<synchronous>, transform_indices = @transform_1, window_bounds = array<i64: 128, 128>}, {pipeline_mode = #tpu.pipeline_mode<synchronous>, transform_indices = @transform_2, window_bounds = array<i64: 1, 128>}, {pipeline_mode = #tpu.pipeline_mode<synchronous>, transform_indices = @transform_3, window_bounds = array<i64: 128, 128>}, {pipeline_mode = #tpu.pipeline_mode<synchronous>, transform_indices = @transform_4, window_bounds = array<i64: 1, 128>}, {pipeline_mode = #tpu.pipeline_mode<synchronous>, transform_indices = @transform_5, window_bounds = array<i64: 128, 128>}, {pipeline_mode = #tpu.pipeline_mode<synchronous>, transform_indices = @transform_6, window_bounds = array<i64: 1, 128>}, {pipeline_mode = #tpu.pipeline_mode<synchronous>, transform_indices = @transform_7, window_bounds = array<i64: 128, 128>}, {pipeline_mode = #tpu.pipeline_mode<synchronous>, transform_indices = @transform_8, window_bounds = array<i64: 1, 128>}, {pipeline_mode = #tpu.pipeline_mode<synchronous>, transform_indices = @transform_9, window_bounds = array<i64: 128, 128>}, {pipeline_mode = #tpu.pipeline_mode<synchronous>, transform_indices = @transform_10, window_bounds = array<i64: 1, 128>}, {pipeline_mode = #tpu.pipeline_mode<synchronous>, transform_indices = @transform_11, window_bounds = array<i64: 128, 128>}, {pipeline_mode = #tpu.pipeline_mode<synchronous>, transform_indices = @transform_12, window_bounds = array<i64: 1, 128>}, {pipeline_mode = #tpu.pipeline_mode<synchronous>, transform_indices = @transform_13, window_bounds = array<i64: 128, 128>}, {pipeline_mode = #tpu.pipeline_mode<synchronous>, transform_indices = @transform_14, window_bounds = array<i64: 1, 128>}, {pipeline_mode = #tpu.pipeline_mode<synchronous>, transform_indices = @transform_15, window_bounds = array<i64: 128, 128>}, {pipeline_mode = #tpu.pipeline_mode<synchronous>, transform_indices = @transform_16, window_bounds = array<i64: 1, 128>}, {transform_indices = @transform_17, window_bounds = array<i64: 8, 128>}]} {
    %c0 = arith.constant 0 : index
    %c0_0 = arith.constant 0 : index
    %0 = vector.load %arg1[%c0, %c0_0] : memref<8x128xbf16, #tpu.memory_space<vmem>>, vector<8x128xbf16>
    %c0_1 = arith.constant 0 : index
    %c0_2 = arith.constant 0 : index
    %1 = vector.load %arg2[%c0_1, %c0_2] : memref<128x128xbf16, #tpu.memory_space<vmem>>, vector<128x128xbf16>
    %c0_3 = arith.constant 0 : index
    %c0_4 = arith.constant 0 : index
    %2 = vector.load %arg3[%c0_3, %c0_4] : memref<1x128xf32, #tpu.memory_space<vmem>>, vector<1x128xf32>
    %c0_5 = arith.constant 0 : index
    %c0_6 = arith.constant 0 : index
    %3 = vector.load %arg4[%c0_5, %c0_6] : memref<128x128xbf16, #tpu.memory_space<vmem>>, vector<128x128xbf16>
    %c0_7 = arith.constant 0 : index
    %c0_8 = arith.constant 0 : index
    %4 = vector.load %arg5[%c0_7, %c0_8] : memref<1x128xf32, #tpu.memory_space<vmem>>, vector<1x128xf32>
    %c0_9 = arith.constant 0 : index
    %c0_10 = arith.constant 0 : index
    %5 = vector.load %arg6[%c0_9, %c0_10] : memref<128x128xbf16, #tpu.memory_space<vmem>>, vector<128x128xbf16>
    %c0_11 = arith.constant 0 : index
    %c0_12 = arith.constant 0 : index
    %6 = vector.load %arg7[%c0_11, %c0_12] : memref<1x128xf32, #tpu.memory_space<vmem>>, vector<1x128xf32>
    %7 = vector.shape_cast %2 : vector<1x128xf32> to vector<1x128xf32>
    %8 = vector.broadcast %7 : vector<1x128xf32> to vector<8x128xf32>
    %9 = vector.shape_cast %4 : vector<1x128xf32> to vector<1x128xf32>
    %10 = vector.broadcast %9 : vector<1x128xf32> to vector<8x128xf32>
    %11 = vector.shape_cast %6 : vector<1x128xf32> to vector<1x128xf32>
    %12 = vector.broadcast %11 : vector<1x128xf32> to vector<8x128xf32>
    %cst = arith.constant dense<0.000000e+00> : vector<8x128xf32>
    %13 = tpu.matmul %0, %1, %cst {dimension_numbers = #tpu.dot_dimension_numbers<[1], [0], [0], [1], [0, 0, 1, 1], [], []>} : vector<8x128xbf16>, vector<128x128xbf16>, vector<8x128xf32> -> vector<8x128xf32>
    %14 = arith.addf %13, %8 : vector<8x128xf32>
    %cst_13 = arith.constant 0.000000e+00 : f32
    %15 = vector.broadcast %cst_13 : f32 to vector<8x128xf32>
    %16 = arith.maximumf %14, %15 : vector<8x128xf32>
    %17 = arith.truncf %16 : vector<8x128xf32> to vector<8x128xbf16>
    %cst_14 = arith.constant dense<0.000000e+00> : vector<8x128xf32>
    %18 = tpu.matmul %17, %3, %cst_14 {dimension_numbers = #tpu.dot_dimension_numbers<[1], [0], [0], [1], [0, 0, 1, 1], [], []>} : vector<8x128xbf16>, vector<128x128xbf16>, vector<8x128xf32> -> vector<8x128xf32>
    %19 = arith.addf %18, %10 : vector<8x128xf32>
    %cst_15 = arith.constant dense<0.000000e+00> : vector<8x128xf32>
    %20 = tpu.matmul %0, %5, %cst_15 {dimension_numbers = #tpu.dot_dimension_numbers<[1], [0], [0], [1], [0, 0, 1, 1], [], []>} : vector<8x128xbf16>, vector<128x128xbf16>, vector<8x128xf32> -> vector<8x128xf32>
    %21 = arith.addf %20, %12 : vector<8x128xf32>
    %22 = arith.addf %19, %21 : vector<8x128xf32>
    %cst_16 = arith.constant 0.000000e+00 : f32
    %23 = vector.broadcast %cst_16 : f32 to vector<8x128xf32>
    %24 = arith.maximumf %22, %23 : vector<8x128xf32>
    %c0_17 = arith.constant 0 : index
    %c0_18 = arith.constant 0 : index
    %25 = vector.load %arg8[%c0_17, %c0_18] : memref<128x128xbf16, #tpu.memory_space<vmem>>, vector<128x128xbf16>
    %c0_19 = arith.constant 0 : index
    %c0_20 = arith.constant 0 : index
    %26 = vector.load %arg9[%c0_19, %c0_20] : memref<1x128xf32, #tpu.memory_space<vmem>>, vector<1x128xf32>
    %c0_21 = arith.constant 0 : index
    %c0_22 = arith.constant 0 : index
    %27 = vector.load %arg10[%c0_21, %c0_22] : memref<128x128xbf16, #tpu.memory_space<vmem>>, vector<128x128xbf16>
    %c0_23 = arith.constant 0 : index
    %c0_24 = arith.constant 0 : index
    %28 = vector.load %arg11[%c0_23, %c0_24] : memref<1x128xf32, #tpu.memory_space<vmem>>, vector<1x128xf32>
    %29 = vector.shape_cast %26 : vector<1x128xf32> to vector<1x128xf32>
    %30 = vector.broadcast %29 : vector<1x128xf32> to vector<8x128xf32>
    %31 = vector.shape_cast %28 : vector<1x128xf32> to vector<1x128xf32>
    %32 = vector.broadcast %31 : vector<1x128xf32> to vector<8x128xf32>
    %33 = arith.truncf %24 : vector<8x128xf32> to vector<8x128xbf16>
    %cst_25 = arith.constant dense<0.000000e+00> : vector<8x128xf32>
    %34 = tpu.matmul %33, %25, %cst_25 {dimension_numbers = #tpu.dot_dimension_numbers<[1], [0], [0], [1], [0, 0, 1, 1], [], []>} : vector<8x128xbf16>, vector<128x128xbf16>, vector<8x128xf32> -> vector<8x128xf32>
    %35 = arith.addf %34, %30 : vector<8x128xf32>
    %cst_26 = arith.constant 0.000000e+00 : f32
    %36 = vector.broadcast %cst_26 : f32 to vector<8x128xf32>
    %37 = arith.maximumf %35, %36 : vector<8x128xf32>
    %38 = arith.truncf %37 : vector<8x128xf32> to vector<8x128xbf16>
    %cst_27 = arith.constant dense<0.000000e+00> : vector<8x128xf32>
    %39 = tpu.matmul %38, %27, %cst_27 {dimension_numbers = #tpu.dot_dimension_numbers<[1], [0], [0], [1], [0, 0, 1, 1], [], []>} : vector<8x128xbf16>, vector<128x128xbf16>, vector<8x128xf32> -> vector<8x128xf32>
    %40 = arith.addf %39, %32 : vector<8x128xf32>
    %41 = arith.addf %40, %24 : vector<8x128xf32>
    %cst_28 = arith.constant 0.000000e+00 : f32
    %42 = vector.broadcast %cst_28 : f32 to vector<8x128xf32>
    %43 = arith.maximumf %41, %42 : vector<8x128xf32>
    %44 = arith.truncf %43 : vector<8x128xf32> to vector<8x128xbf16>
    %cst_29 = arith.constant dense<0.000000e+00> : vector<8x128xf32>
    %45 = tpu.matmul %44, %25, %cst_29 {dimension_numbers = #tpu.dot_dimension_numbers<[1], [0], [0], [1], [0, 0, 1, 1], [], []>} : vector<8x128xbf16>, vector<128x128xbf16>, vector<8x128xf32> -> vector<8x128xf32>
    %46 = arith.addf %45, %30 : vector<8x128xf32>
    %cst_30 = arith.constant 0.000000e+00 : f32
    %47 = vector.broadcast %cst_30 : f32 to vector<8x128xf32>
    %48 = arith.maximumf %46, %47 : vector<8x128xf32>
    %49 = arith.truncf %48 : vector<8x128xf32> to vector<8x128xbf16>
    %cst_31 = arith.constant dense<0.000000e+00> : vector<8x128xf32>
    %50 = tpu.matmul %49, %27, %cst_31 {dimension_numbers = #tpu.dot_dimension_numbers<[1], [0], [0], [1], [0, 0, 1, 1], [], []>} : vector<8x128xbf16>, vector<128x128xbf16>, vector<8x128xf32> -> vector<8x128xf32>
    %51 = arith.addf %50, %32 : vector<8x128xf32>
    %52 = arith.addf %51, %43 : vector<8x128xf32>
    %cst_32 = arith.constant 0.000000e+00 : f32
    %53 = vector.broadcast %cst_32 : f32 to vector<8x128xf32>
    %54 = arith.maximumf %52, %53 : vector<8x128xf32>
    %c0_33 = arith.constant 0 : index
    %c0_34 = arith.constant 0 : index
    %55 = vector.load %arg12[%c0_33, %c0_34] : memref<128x128xbf16, #tpu.memory_space<vmem>>, vector<128x128xbf16>
    %c0_35 = arith.constant 0 : index
    %c0_36 = arith.constant 0 : index
    %56 = vector.load %arg13[%c0_35, %c0_36] : memref<1x128xf32, #tpu.memory_space<vmem>>, vector<1x128xf32>
    %c0_37 = arith.constant 0 : index
    %c0_38 = arith.constant 0 : index
    %57 = vector.load %arg14[%c0_37, %c0_38] : memref<128x128xbf16, #tpu.memory_space<vmem>>, vector<128x128xbf16>
    %c0_39 = arith.constant 0 : index
    %c0_40 = arith.constant 0 : index
    %58 = vector.load %arg15[%c0_39, %c0_40] : memref<1x128xf32, #tpu.memory_space<vmem>>, vector<1x128xf32>
    %c0_41 = arith.constant 0 : index
    %c0_42 = arith.constant 0 : index
    %59 = vector.load %arg16[%c0_41, %c0_42] : memref<128x128xbf16, #tpu.memory_space<vmem>>, vector<128x128xbf16>
    %c0_43 = arith.constant 0 : index
    %c0_44 = arith.constant 0 : index
    %60 = vector.load %arg17[%c0_43, %c0_44] : memref<1x128xf32, #tpu.memory_space<vmem>>, vector<1x128xf32>
    %61 = vector.shape_cast %56 : vector<1x128xf32> to vector<1x128xf32>
    %62 = vector.broadcast %61 : vector<1x128xf32> to vector<8x128xf32>
    %63 = vector.shape_cast %58 : vector<1x128xf32> to vector<1x128xf32>
    %64 = vector.broadcast %63 : vector<1x128xf32> to vector<8x128xf32>
    %65 = vector.shape_cast %60 : vector<1x128xf32> to vector<1x128xf32>
    %66 = vector.broadcast %65 : vector<1x128xf32> to vector<8x128xf32>
    %67 = arith.truncf %54 : vector<8x128xf32> to vector<8x128xbf16>
    %cst_45 = arith.constant dense<0.000000e+00> : vector<8x128xf32>
    %68 = tpu.matmul %67, %55, %cst_45 {dimension_numbers = #tpu.dot_dimension_numbers<[1], [0], [0], [1], [0, 0, 1, 1], [], []>} : vector<8x128xbf16>, vector<128x128xbf16>, vector<8x128xf32> -> vector<8x128xf32>
    %69 = arith.addf %68, %62 : vector<8x128xf32>
    %cst_46 = arith.constant 0.000000e+00 : f32
    %70 = vector.broadcast %cst_46 : f32 to vector<8x128xf32>
    %71 = arith.maximumf %69, %70 : vector<8x128xf32>
    %72 = arith.truncf %71 : vector<8x128xf32> to vector<8x128xbf16>
    %cst_47 = arith.constant dense<0.000000e+00> : vector<8x128xf32>
    %73 = tpu.matmul %72, %57, %cst_47 {dimension_numbers = #tpu.dot_dimension_numbers<[1], [0], [0], [1], [0, 0, 1, 1], [], []>} : vector<8x128xbf16>, vector<128x128xbf16>, vector<8x128xf32> -> vector<8x128xf32>
    %74 = arith.addf %73, %64 : vector<8x128xf32>
    %cst_48 = arith.constant dense<0.000000e+00> : vector<8x128xf32>
    %75 = tpu.matmul %67, %59, %cst_48 {dimension_numbers = #tpu.dot_dimension_numbers<[1], [0], [0], [1], [0, 0, 1, 1], [], []>} : vector<8x128xbf16>, vector<128x128xbf16>, vector<8x128xf32> -> vector<8x128xf32>
    %76 = arith.addf %75, %66 : vector<8x128xf32>
    %77 = arith.addf %74, %76 : vector<8x128xf32>
    %c0_49 = arith.constant 0 : index
    %c0_50 = arith.constant 0 : index
    %78 = vector.load %arg18[%c0_49, %c0_50] : memref<8x128xf32, #tpu.memory_space<vmem>>, vector<8x128xf32>
    tpu.vector_store %arg18[%c0_49, %c0_50], %77 {strides = array<i32>} : memref<8x128xf32, #tpu.memory_space<vmem>>, vector<8x128xf32>,
    return
  }
  func.func @transform_0(%arg0: i32) -> (i32, i32) {
    %c0_i32 = arith.constant 0 : i32
    %c0_i32_0 = arith.constant 0 : i32
    return %arg0, %c0_i32 : i32, i32
  }
  func.func @transform_1(%arg0: i32) -> (i32, i32) {
    %c0_i32 = arith.constant 0 : i32
    %c0_i32_0 = arith.constant 0 : i32
    %c0_i32_1 = arith.constant 0 : i32
    return %c0_i32, %c0_i32_0 : i32, i32
  }
  func.func @transform_2(%arg0: i32) -> (i32, i32) {
    %c0_i32 = arith.constant 0 : i32
    %c0_i32_0 = arith.constant 0 : i32
    %c0_i32_1 = arith.constant 0 : i32
    return %c0_i32, %c0_i32_0 : i32, i32
  }
  func.func @transform_3(%arg0: i32) -> (i32, i32) {
    %c0_i32 = arith.constant 0 : i32
    %c0_i32_0 = arith.constant 0 : i32
    %c0_i32_1 = arith.constant 0 : i32
    return %c0_i32, %c0_i32_0 : i32, i32
  }
  func.func @transform_4(%arg0: i32) -> (i32, i32) {
    %c0_i32 = arith.constant 0 : i32
    %c0_i32_0 = arith.constant 0 : i32
    %c0_i32_1 = arith.constant 0 : i32
    return %c0_i32, %c0_i32_0 : i32, i32
  }
  func.func @transform_5(%arg0: i32) -> (i32, i32) {
    %c0_i32 = arith.constant 0 : i32
    %c0_i32_0 = arith.constant 0 : i32
    %c0_i32_1 = arith.constant 0 : i32
    return %c0_i32, %c0_i32_0 : i32, i32
  }
  func.func @transform_6(%arg0: i32) -> (i32, i32) {
    %c0_i32 = arith.constant 0 : i32
    %c0_i32_0 = arith.constant 0 : i32
    %c0_i32_1 = arith.constant 0 : i32
    return %c0_i32, %c0_i32_0 : i32, i32
  }
  func.func @transform_7(%arg0: i32) -> (i32, i32) {
    %c0_i32 = arith.constant 0 : i32
    %c0_i32_0 = arith.constant 0 : i32
    %c0_i32_1 = arith.constant 0 : i32
    return %c0_i32, %c0_i32_0 : i32, i32
  }
  func.func @transform_8(%arg0: i32) -> (i32, i32) {
    %c0_i32 = arith.constant 0 : i32
    %c0_i32_0 = arith.constant 0 : i32
    %c0_i32_1 = arith.constant 0 : i32
    return %c0_i32, %c0_i32_0 : i32, i32
  }
  func.func @transform_9(%arg0: i32) -> (i32, i32) {
    %c0_i32 = arith.constant 0 : i32
    %c0_i32_0 = arith.constant 0 : i32
    %c0_i32_1 = arith.constant 0 : i32
    return %c0_i32, %c0_i32_0 : i32, i32
  }
  func.func @transform_10(%arg0: i32) -> (i32, i32) {
    %c0_i32 = arith.constant 0 : i32
    %c0_i32_0 = arith.constant 0 : i32
    %c0_i32_1 = arith.constant 0 : i32
    return %c0_i32, %c0_i32_0 : i32, i32
  }
  func.func @transform_11(%arg0: i32) -> (i32, i32) {
    %c0_i32 = arith.constant 0 : i32
    %c0_i32_0 = arith.constant 0 : i32
    %c0_i32_1 = arith.constant 0 : i32
    return %c0_i32, %c0_i32_0 : i32, i32
  }
  func.func @transform_12(%arg0: i32) -> (i32, i32) {
    %c0_i32 = arith.constant 0 : i32
    %c0_i32_0 = arith.constant 0 : i32
    %c0_i32_1 = arith.constant 0 : i32
    return %c0_i32, %c0_i32_0 : i32, i32
  }
  func.func @transform_13(%arg0: i32) -> (i32, i32) {
    %c0_i32 = arith.constant 0 : i32
    %c0_i32_0 = arith.constant 0 : i32
    %c0_i32_1 = arith.constant 0 : i32
    return %c0_i32, %c0_i32_0 : i32, i32
  }
  func.func @transform_14(%arg0: i32) -> (i32, i32) {
    %c0_i32 = arith.constant 0 : i32
    %c0_i32_0 = arith.constant 0 : i32
    %c0_i32_1 = arith.constant 0 : i32
    return %c0_i32, %c0_i32_0 : i32, i32
  }
  func.func @transform_15(%arg0: i32) -> (i32, i32) {
    %c0_i32 = arith.constant 0 : i32
    %c0_i32_0 = arith.constant 0 : i32
    %c0_i32_1 = arith.constant 0 : i32
    return %c0_i32, %c0_i32_0 : i32, i32
  }
  func.func @transform_16(%arg0: i32) -> (i32, i32) {
    %c0_i32 = arith.constant 0 : i32
    %c0_i32_0 = arith.constant 0 : i32
    %c0_i32_1 = arith.constant 0 : i32
    return %c0_i32, %c0_i32_0 : i32, i32
  }
  func.func @transform_17(%arg0: i32) -> (i32, i32) {
    %c0_i32 = arith.constant 0 : i32
    %c0_i32_0 = arith.constant 0 : i32
    return %arg0, %c0_i32 : i32, i32
  }
}

</mosaic_0001>

<llo_original>
// kernel: tpu_custom_call.1
$region0: #{tpu_custom_call.1}
  #allocation0 [shape = 'u32[]', space=smem, size = 0x4, offset = 0x4, fixed_abs, tag = 'smem constant byte address 0x4 - core index']
  #allocation1 [shape = 'u32[144,128]{1,0:T(1,128)}', space=vmem, size = 0x12000, scoped, tag = 'internal scratch']
  %s0 = inlined_call_operand.hbm [shape: bf16[8,128], index: 0, kind: input, shape index: {}]
  %s1 = inlined_call_operand.hbm [shape: bf16[128,128], index: 1, kind: input, shape index: {}]
  %s2 = inlined_call_operand.vmem [shape: f32[1,128], index: 2, kind: input, shape index: {}]
  %s3 = inlined_call_operand.hbm [shape: bf16[128,128], index: 3, kind: input, shape index: {}]
  %s4 = inlined_call_operand.vmem [shape: f32[1,128], index: 4, kind: input, shape index: {}]
  %s5 = inlined_call_operand.hbm [shape: bf16[128,128], index: 5, kind: input, shape index: {}]
  %s6 = inlined_call_operand.vmem [shape: f32[1,128], index: 6, kind: input, shape index: {}]
  %s7 = inlined_call_operand.hbm [shape: bf16[128,128], index: 7, kind: input, shape index: {}]
  %s8 = inlined_call_operand.vmem [shape: f32[1,128], index: 8, kind: input, shape index: {}]
  %s9 = inlined_call_operand.hbm [shape: bf16[128,128], index: 9, kind: input, shape index: {}]
  %s10 = inlined_call_operand.vmem [shape: f32[1,128], index: 10, kind: input, shape index: {}]
  %s11 = inlined_call_operand.hbm [shape: bf16[128,128], index: 11, kind: input, shape index: {}]
  %s12 = inlined_call_operand.vmem [shape: f32[1,128], index: 12, kind: input, shape index: {}]
  %s13 = inlined_call_operand.hbm [shape: bf16[128,128], index: 13, kind: input, shape index: {}]
  %s14 = inlined_call_operand.vmem [shape: f32[1,128], index: 14, kind: input, shape index: {}]
  %s15 = inlined_call_operand.hbm [shape: bf16[128,128], index: 15, kind: input, shape index: {}]
  %s16 = inlined_call_operand.vmem [shape: f32[1,128], index: 16, kind: input, shape index: {}]
  %s17 = inlined_call_operand.hbm [shape: f32[8,128], index: 17, kind: output, shape index: {}]
  %s18 = sld [smem:[#allocation0]]
  $region114: #{tpu_custom_call.1} parent=0
    _
  %s20 = ssub.s32 1, %s18
  %s21 = scalar_select 0, %s20, %s18
  $region1: #{tpu_custom_call.1} parent=0
    #allocation2 [shape = 'u8[2048]{0}', space=vmem, size = 0x800, scoped, tag = 'input window, operand 0, single buffered']
    #allocation3 [shape = 's32[1]{0}', space=sflag, size = 0x4, scoped, tag = 'scoped memory for tpu_custom_call.1']
    #allocation4 [shape = 's32[1]{0}', space=sflag, size = 0x4, scoped, tag = 'scoped memory for tpu_custom_call.1']
    #allocation5 [shape = 'u8[32768]{0}', space=vmem, size = 0x8000, scoped, tag = 'input window, operand 1, single buffered']
    #allocation6 [shape = 's32[1]{0}', space=sflag, size = 0x4, scoped, tag = 'scoped memory for tpu_custom_call.1']
    #allocation7 [shape = 'u8[32768]{0}', space=vmem, size = 0x8000, scoped, tag = 'input window, operand 3, single buffered']
    #allocation8 [shape = 'u8[32768]{0}', space=vmem, size = 0x8000, scoped, tag = 'input window, operand 5, single buffered']
    #allocation9 [shape = 's32[1]{0}', space=sflag, size = 0x4, scoped, tag = 'scoped memory for tpu_custom_call.1']
    #allocation10 [shape = 'u8[32768]{0}', space=vmem, size = 0x8000, scoped, tag = 'input window, operand 7, single buffered']
    #allocation11 [shape = 'u8[32768]{0}', space=vmem, size = 0x8000, scoped, tag = 'input window, operand 9, single buffered']
    #allocation12 [shape = 's32[1]{0}', space=sflag, size = 0x4, scoped, tag = 'scoped memory for tpu_custom_call.1']
    #allocation13 [shape = 'u8[32768]{0}', space=vmem, size = 0x8000, scoped, tag = 'input window, operand 11, single buffered']
    #allocation14 [shape = 'u8[32768]{0}', space=vmem, size = 0x8000, scoped, tag = 'input window, operand 13, single buffered']
    #allocation15 [shape = 's32[1]{0}', space=sflag, size = 0x4, scoped, tag = 'scoped memory for tpu_custom_call.1']
    #allocation16 [shape = 'u8[32768]{0}', space=vmem, size = 0x8000, scoped, tag = 'input window, operand 15, single buffered']
    #allocation17 [shape = 'u8[4096]{0}', space=vmem, size = 0x1000, scoped, tag = 'output window, operand 0, single buffered']
    %22 = vsyncpa [#allocation3], 0
    %23 = vsyncpa [#allocation6], 0
    %24 = vsyncpa [#allocation9], 0
    %25 = vsyncpa [#allocation12], 0
    %26 = vsyncpa [#allocation15], 0
    %27 = vsyncpa [#allocation4], 0
    // Predicated region
    $region2: #{tpu_custom_call.1} parent=1 // pred_check
      _
    $region3: #{tpu_custom_call.1} parent=1 // pred_check_branch
      %29 = sbr.rel (0) target = $region5
    $region4: #{tpu_custom_call.1} parent=1 // pred_region
      %s31 = ssub.s32 64, 64
      %32 = vsyncadd [#allocation3], %s31
      %s34 = sshll.u32 [#allocation2], 4
      %s35 = int_to_ptr.vmem [resolvable:$true] %s34
      %37 = dma.hbm_to_vmem [thread:$0]  %s0, 64, %s35, [#allocation3]
    $region5: #{tpu_custom_call.1} parent=1 // pred_fallthru
      _
    // Predicated region
    $region6: #{tpu_custom_call.1} parent=1 // pred_check
      _
    $region7: #{tpu_custom_call.1} parent=1 // pred_check_branch
      %39 = sbr.rel (0) target = $region9
    $region8: #{tpu_custom_call.1} parent=1 // pred_region
      %s41 = ssub.s32 1024, 1024
      %42 = vsyncadd [#allocation6], %s41
      %s43 = sshll.u32 [#allocation5], 4
      %s44 = int_to_ptr.vmem [resolvable:$true] %s43
      %49 = dma.hbm_to_vmem [thread:$0]  %s1, 1024, %s44, [#allocation6], 64, 64, 4
    $region9: #{tpu_custom_call.1} parent=1 // pred_fallthru
      _
    // Predicated region
    $region10: #{tpu_custom_call.1} parent=1 // pred_check
      _
    $region11: #{tpu_custom_call.1} parent=1 // pred_check_branch
      %51 = sbr.rel (0) target = $region13
    $region12: #{tpu_custom_call.1} parent=1 // pred_region
      _
    $region13: #{tpu_custom_call.1} parent=1 // pred_fallthru
      _
    // Predicated region
    $region14: #{tpu_custom_call.1} parent=1 // pred_check
      _
    $region15: #{tpu_custom_call.1} parent=1 // pred_check_branch
      %53 = sbr.rel (0) target = $region17
    $region16: #{tpu_custom_call.1} parent=1 // pred_region
      %s55 = ssub.s32 1024, 1024
      %56 = vsyncadd [#allocation6], %s55
      %s57 = sshll.u32 [#allocation7], 4
      %s58 = int_to_ptr.vmem [resolvable:$true] %s57
      %63 = dma.hbm_to_vmem [thread:$0]  %s3, 1024, %s58, [#allocation6], 64, 64, 4
    $region17: #{tpu_custom_call.1} parent=1 // pred_fallthru
      _
    // Predicated region
    $region18: #{tpu_custom_call.1} parent=1 // pred_check
      _
    $region19: #{tpu_custom_call.1} parent=1 // pred_check_branch
      %65 = sbr.rel (0) target = $region21
    $region20: #{tpu_custom_call.1} parent=1 // pred_region
      _
    $region21: #{tpu_custom_call.1} parent=1 // pred_fallthru
      _
    // Predicated region
    $region22: #{tpu_custom_call.1} parent=1 // pred_check
      _
    $region23: #{tpu_custom_call.1} parent=1 // pred_check_branch
      %67 = sbr.rel (0) target = $region25
    $region24: #{tpu_custom_call.1} parent=1 // pred_region
      %s69 = ssub.s32 1024, 1024
      %70 = vsyncadd [#allocation9], %s69
      %s71 = sshll.u32 [#allocation8], 4
      %s72 = int_to_ptr.vmem [resolvable:$true] %s71
      %77 = dma.hbm_to_vmem [thread:$0]  %s5, 1024, %s72, [#allocation9], 64, 64, 4
    $region25: #{tpu_custom_call.1} parent=1 // pred_fallthru
      _
    // Predicated region
    $region26: #{tpu_custom_call.1} parent=1 // pred_check
      _
    $region27: #{tpu_custom_call.1} parent=1 // pred_check_branch
      %79 = sbr.rel (0) target = $region29
    $region28: #{tpu_custom_call.1} parent=1 // pred_region
      _
    $region29: #{tpu_custom_call.1} parent=1 // pred_fallthru
      _
    // Predicated region
    $region30: #{tpu_custom_call.1} parent=1 // pred_check
      _
    $region31: #{tpu_custom_call.1} parent=1 // pred_check_branch
      %81 = sbr.rel (0) target = $region33
    $region32: #{tpu_custom_call.1} parent=1 // pred_region
      %s83 = ssub.s32 1024, 1024
      %84 = vsyncadd [#allocation9], %s83
      %s85 = sshll.u32 [#allocation10], 4
      %s86 = int_to_ptr.vmem [resolvable:$true] %s85
      %91 = dma.hbm_to_vmem [thread:$0]  %s7, 1024, %s86, [#allocation9], 64, 64, 4
    $region33: #{tpu_custom_call.1} parent=1 // pred_fallthru
      _
    // Predicated region
    $region34: #{tpu_custom_call.1} parent=1 // pred_check
      _
    $region35: #{tpu_custom_call.1} parent=1 // pred_check_branch
      %93 = sbr.rel (0) target = $region37
    $region36: #{tpu_custom_call.1} parent=1 // pred_region
      _
    $region37: #{tpu_custom_call.1} parent=1 // pred_fallthru
      _
    // Predicated region
    $region38: #{tpu_custom_call.1} parent=1 // pred_check
      _
    $region39: #{tpu_custom_call.1} parent=1 // pred_check_branch
      %95 = sbr.rel (0) target = $region41
    $region40: #{tpu_custom_call.1} parent=1 // pred_region
      %s97 = ssub.s32 1024, 1024
      %98 = vsyncadd [#allocation12], %s97
      %s99 = sshll.u32 [#allocation11], 4
      %s100 = int_to_ptr.vmem [resolvable:$true] %s99
      %105 = dma.hbm_to_vmem [thread:$0]  %s9, 1024, %s100, [#allocation12], 64, 64, 4
    $region41: #{tpu_custom_call.1} parent=1 // pred_fallthru
      _
    // Predicated region
    $region42: #{tpu_custom_call.1} parent=1 // pred_check
      _
    $region43: #{tpu_custom_call.1} parent=1 // pred_check_branch
      %107 = sbr.rel (0) target = $region45
    $region44: #{tpu_custom_call.1} parent=1 // pred_region
      _
    $region45: #{tpu_custom_call.1} parent=1 // pred_fallthru
      _
    // Predicated region
    $region46: #{tpu_custom_call.1} parent=1 // pred_check
      _
    $region47: #{tpu_custom_call.1} parent=1 // pred_check_branch
      %109 = sbr.rel (0) target = $region49
    $region48: #{tpu_custom_call.1} parent=1 // pred_region
      %s111 = ssub.s32 1024, 1024
      %112 = vsyncadd [#allocation12], %s111
      %s113 = sshll.u32 [#allocation13], 4
      %s114 = int_to_ptr.vmem [resolvable:$true] %s113
      %119 = dma.hbm_to_vmem [thread:$0]  %s11, 1024, %s114, [#allocation12], 64, 64, 4
    $region49: #{tpu_custom_call.1} parent=1 // pred_fallthru
      _
    // Predicated region
    $region50: #{tpu_custom_call.1} parent=1 // pred_check
      _
    $region51: #{tpu_custom_call.1} parent=1 // pred_check_branch
      %121 = sbr.rel (0) target = $region53
    $region52: #{tpu_custom_call.1} parent=1 // pred_region
      _
    $region53: #{tpu_custom_call.1} parent=1 // pred_fallthru
      _
    // Predicated region
    $region54: #{tpu_custom_call.1} parent=1 // pred_check
      _
    $region55: #{tpu_custom_call.1} parent=1 // pred_check_branch
      %123 = sbr.rel (0) target = $region57
    $region56: #{tpu_custom_call.1} parent=1 // pred_region
      %s125 = ssub.s32 1024, 1024
      %126 = vsyncadd [#allocation15], %s125
      %s127 = sshll.u32 [#allocation14], 4
      %s128 = int_to_ptr.vmem [resolvable:$true] %s127
      %133 = dma.hbm_to_vmem [thread:$0]  %s13, 1024, %s128, [#allocation15], 64, 64, 4
    $region57: #{tpu_custom_call.1} parent=1 // pred_fallthru
      _
    // Predicated region
    $region58: #{tpu_custom_call.1} parent=1 // pred_check
      _
    $region59: #{tpu_custom_call.1} parent=1 // pred_check_branch
      %135 = sbr.rel (0) target = $region61
    $region60: #{tpu_custom_call.1} parent=1 // pred_region
      _
    $region61: #{tpu_custom_call.1} parent=1 // pred_fallthru
      _
    // Predicated region
    $region62: #{tpu_custom_call.1} parent=1 // pred_check
      _
    $region63: #{tpu_custom_call.1} parent=1 // pred_check_branch
      %137 = sbr.rel (0) target = $region65
    $region64: #{tpu_custom_call.1} parent=1 // pred_region
      %s139 = ssub.s32 1024, 1024
      %140 = vsyncadd [#allocation15], %s139
      %s141 = sshll.u32 [#allocation16], 4
      %s142 = int_to_ptr.vmem [resolvable:$true] %s141
      %147 = dma.hbm_to_vmem [thread:$0]  %s15, 1024, %s142, [#allocation15], 64, 64, 4
    $region65: #{tpu_custom_call.1} parent=1 // pred_fallthru
      _
    // Predicated region
    $region66: #{tpu_custom_call.1} parent=1 // pred_check
      _
    $region67: #{tpu_custom_call.1} parent=1 // pred_check_branch
      %149 = sbr.rel (0) target = $region69
    $region68: #{tpu_custom_call.1} parent=1 // pred_region
      _
    $region69: #{tpu_custom_call.1} parent=1 // pred_fallthru
      _
    // Predicated region
    $region70: #{tpu_custom_call.1} parent=1 // pred_check
      _
    $region71: #{tpu_custom_call.1} parent=1 // pred_check_branch
      %151 = sbr.rel (0) target = $region73
    $region72: #{tpu_custom_call.1} parent=1 // pred_region
      %152 = dma.done [#allocation3], 64
    $region73: #{tpu_custom_call.1} parent=1 // pred_fallthru
      _
    // Predicated region
    $region74: #{tpu_custom_call.1} parent=1 // pred_check
      _
    $region75: #{tpu_custom_call.1} parent=1 // pred_check_branch
      %154 = sbr.rel (0) target = $region77
    $region76: #{tpu_custom_call.1} parent=1 // pred_region
      %155 = dma.done [#allocation6], 1024
    $region77: #{tpu_custom_call.1} parent=1 // pred_fallthru
      _
    // Predicated region
    $region78: #{tpu_custom_call.1} parent=1 // pred_check
      _
    $region79: #{tpu_custom_call.1} parent=1 // pred_check_branch
      %157 = sbr.rel (0) target = $region81
    $region80: #{tpu_custom_call.1} parent=1 // pred_region
      %158 = dma.done [#allocation6], 1024
    $region81: #{tpu_custom_call.1} parent=1 // pred_fallthru
      _
    // Predicated region
    $region82: #{tpu_custom_call.1} parent=1 // pred_check
      _
    $region83: #{tpu_custom_call.1} parent=1 // pred_check_branch
      %160 = sbr.rel (0) target = $region85
    $region84: #{tpu_custom_call.1} parent=1 // pred_region
      %161 = dma.done [#allocation9], 1024
    $region85: #{tpu_custom_call.1} parent=1 // pred_fallthru
      _
    // Predicated region
    $region86: #{tpu_custom_call.1} parent=1 // pred_check
      _
    $region87: #{tpu_custom_call.1} parent=1 // pred_check_branch
      %163 = sbr.rel (0) target = $region89
    $region88: #{tpu_custom_call.1} parent=1 // pred_region
      %164 = dma.done [#allocation9], 1024
    $region89: #{tpu_custom_call.1} parent=1 // pred_fallthru
      _
    // Predicated region
    $region90: #{tpu_custom_call.1} parent=1 // pred_check
      _
    $region91: #{tpu_custom_call.1} parent=1 // pred_check_branch
      %166 = sbr.rel (0) target = $region93
    $region92: #{tpu_custom_call.1} parent=1 // pred_region
      %167 = dma.done [#allocation12], 1024
    $region93: #{tpu_custom_call.1} parent=1 // pred_fallthru
      _
    // Predicated region
    $region94: #{tpu_custom_call.1} parent=1 // pred_check
      _
    $region95: #{tpu_custom_call.1} parent=1 // pred_check_branch
      %169 = sbr.rel (0) target = $region97
    $region96: #{tpu_custom_call.1} parent=1 // pred_region
      %170 = dma.done [#allocation12], 1024
    $region97: #{tpu_custom_call.1} parent=1 // pred_fallthru
      _
    // Predicated region
    $region98: #{tpu_custom_call.1} parent=1 // pred_check
      _
    $region99: #{tpu_custom_call.1} parent=1 // pred_check_branch
      %172 = sbr.rel (0) target = $region101
    $region100: #{tpu_custom_call.1} parent=1 // pred_region
      %173 = dma.done [#allocation15], 1024
    $region101: #{tpu_custom_call.1} parent=1 // pred_fallthru
      _
    // Predicated region
    $region102: #{tpu_custom_call.1} parent=1 // pred_check
      _
    $region103: #{tpu_custom_call.1} parent=1 // pred_check_branch
      %175 = sbr.rel (0) target = $region105
    $region104: #{tpu_custom_call.1} parent=1 // pred_region
      %176 = dma.done [#allocation15], 1024
    $region105: #{tpu_custom_call.1} parent=1 // pred_fallthru
      _
    %v178 = vld [vmem:[#allocation2] sm:$0xf]
    %v179 = vld [vmem:[#allocation5] sm:$0xf]
    %v180 = vld [vmem:[#allocation5 + $0x4] sm:$0xf]
    %v181 = vld [vmem:[#allocation5 + $0x8] sm:$0xf]
    %v182 = vld [vmem:[#allocation5 + $0xc] sm:$0xf]
    %v183 = vld [vmem:[#allocation5 + $0x10] sm:$0xf]
    %v184 = vld [vmem:[#allocation5 + $0x14] sm:$0xf]
    %v185 = vld [vmem:[#allocation5 + $0x18] sm:$0xf]
    %v186 = vld [vmem:[#allocation5 + $0x1c] sm:$0xf]
    %v187 = vld [vmem:[#allocation5 + $0x20] sm:$0xf]
    %v188 = vld [vmem:[#allocation5 + $0x24] sm:$0xf]
    %v189 = vld [vmem:[#allocation5 + $0x28] sm:$0xf]
    %v190 = vld [vmem:[#allocation5 + $0x2c] sm:$0xf]
    %v191 = vld [vmem:[#allocation5 + $0x30] sm:$0xf]
    %v192 = vld [vmem:[#allocation5 + $0x34] sm:$0xf]
    %v193 = vld [vmem:[#allocation5 + $0x38] sm:$0xf]
    %v194 = vld [vmem:[#allocation5 + $0x3c] sm:$0xf]
    %v195 = vld [vmem:[%s2] sm:$0x1]
    %v196 = vld [vmem:[#allocation7] sm:$0xf]
    %v197 = vld [vmem:[#allocation7 + $0x4] sm:$0xf]
    %v198 = vld [vmem:[#allocation7 + $0x8] sm:$0xf]
    %v199 = vld [vmem:[#allocation7 + $0xc] sm:$0xf]
    %v200 = vld [vmem:[#allocation7 + $0x10] sm:$0xf]
    %v201 = vld [vmem:[#allocation7 + $0x14] sm:$0xf]
    %v202 = vld [vmem:[#allocation7 + $0x18] sm:$0xf]
    %v203 = vld [vmem:[#allocation7 + $0x1c] sm:$0xf]
    %v204 = vld [vmem:[#allocation7 + $0x20] sm:$0xf]
    %v205 = vld [vmem:[#allocation7 + $0x24] sm:$0xf]
    %v206 = vld [vmem:[#allocation7 + $0x28] sm:$0xf]
    %v207 = vld [vmem:[#allocation7 + $0x2c] sm:$0xf]
    %v208 = vld [vmem:[#allocation7 + $0x30] sm:$0xf]
    %v209 = vld [vmem:[#allocation7 + $0x34] sm:$0xf]
    %v210 = vld [vmem:[#allocation7 + $0x38] sm:$0xf]
    %v211 = vld [vmem:[#allocation7 + $0x3c] sm:$0xf]
    %v212 = vld [vmem:[%s4] sm:$0x1]
    %v213 = vld [vmem:[#allocation8] sm:$0xf]
    %v214 = vld [vmem:[#allocation8 + $0x4] sm:$0xf]
    %v215 = vld [vmem:[#allocation8 + $0x8] sm:$0xf]
    %v216 = vld [vmem:[#allocation8 + $0xc] sm:$0xf]
    %v217 = vld [vmem:[#allocation8 + $0x10] sm:$0xf]
    %v218 = vld [vmem:[#allocation8 + $0x14] sm:$0xf]
    %v219 = vld [vmem:[#allocation8 + $0x18] sm:$0xf]
    %v220 = vld [vmem:[#allocation8 + $0x1c] sm:$0xf]
    %v221 = vld [vmem:[#allocation8 + $0x20] sm:$0xf]
    %v222 = vld [vmem:[#allocation8 + $0x24] sm:$0xf]
    %v223 = vld [vmem:[#allocation8 + $0x28] sm:$0xf]
    %v224 = vld [vmem:[#allocation8 + $0x2c] sm:$0xf]
    %v225 = vld [vmem:[#allocation8 + $0x30] sm:$0xf]
    %v226 = vld [vmem:[#allocation8 + $0x34] sm:$0xf]
    %v227 = vld [vmem:[#allocation8 + $0x38] sm:$0xf]
    %v228 = vld [vmem:[#allocation8 + $0x3c] sm:$0xf]
    %v229 = vld [vmem:[%s6] sm:$0x1]
    %v231 = vlaneseq
    %v232 = vshrl.u32 %v231, 7
    %v233 = vsub.s32 0, %v232
    %v234 = vrot.slane %v195, %v233
    %v237 = vlaneseq
    %v238 = vshrl.u32 %v237, 7
    %v239 = vsub.s32 0, %v238
    %v240 = vrot.slane %v212, %v239
    %v243 = vlaneseq
    %v244 = vshrl.u32 %v243, 7
    %v245 = vsub.s32 0, %v244
    %v246 = vrot.slane %v229, %v245
    %v264 = vunpack.c.l.b16 %v179
    %v265 = vunpack.c.l.b16 %v180
    %v266 = vunpack.c.l.b16 %v181
    %v267 = vunpack.c.l.b16 %v182
    %v268 = vunpack.c.l.b16 %v183
    %v269 = vunpack.c.l.b16 %v184
    %v270 = vunpack.c.l.b16 %v185
    %v271 = vunpack.c.l.b16 %v186
    %v272 = vunpack.c.l.b16 %v187
    %v273 = vunpack.c.l.b16 %v188
    %v274 = vunpack.c.l.b16 %v189
    %v275 = vunpack.c.l.b16 %v190
    %v276 = vunpack.c.l.b16 %v191
    %v277 = vunpack.c.l.b16 %v192
    %v278 = vunpack.c.l.b16 %v193
    %v279 = vunpack.c.l.b16 %v194
    %v280 = vpack.c.b16 %v265, %v264
    %v281 = vpack.c.b16 %v267, %v266
    %v282 = vpack.c.b16 %v269, %v268
    %v283 = vpack.c.b16 %v271, %v270
    %v284 = vpack.c.b16 %v273, %v272
    %v285 = vpack.c.b16 %v275, %v274
    %v286 = vpack.c.b16 %v277, %v276
    %v287 = vpack.c.b16 %v279, %v278
    %296 = vmatprep.subr.bf16.mxu0 0
    %297 = vmatpush1.bf16.msra.mxu0 %v287
    %298 = vmatprep.subr.bf16.mxu0 0
    %299 = vmatpush1.bf16.msra.mxu0 %v286
    %300 = vmatprep.subr.bf16.mxu0 0
    %301 = vmatpush1.bf16.msra.mxu0 %v285
    %302 = vmatprep.subr.bf16.mxu0 0
    %303 = vmatpush1.bf16.msra.mxu0 %v284
    %304 = vmatprep.subr.bf16.mxu0 0
    %305 = vmatpush1.bf16.msra.mxu0 %v283
    %306 = vmatprep.subr.bf16.mxu0 0
    %307 = vmatpush1.bf16.msra.mxu0 %v282
    %308 = vmatprep.subr.bf16.mxu0 0
    %309 = vmatpush1.bf16.msra.mxu0 %v281
    %310 = vmatprep.subr.bf16.mxu0 0
    %311 = vmatpush1.bf16.msra.mxu0 %v280
    %312 = vmatprep.subr.bf16.mxu0 0
    %313 = vmatpush2.bf16.msra.mxu0 0
    %314 = vmatprep.subr.bf16.mxu0 0
    %315 = vmatpush2.bf16.msra.mxu0 0
    %316 = vmatprep.subr.bf16.mxu0 0
    %317 = vmatpush2.bf16.msra.mxu0 0
    %318 = vmatprep.subr.bf16.mxu0 0
    %319 = vmatpush2.bf16.msra.mxu0 0
    %320 = vmatprep.subr.bf16.mxu0 0
    %321 = vmatpush2.bf16.msra.mxu0 0
    %322 = vmatprep.subr.bf16.mxu0 0
    %323 = vmatpush2.bf16.msra.mxu0 0
    %324 = vmatprep.subr.bf16.mxu0 0
    %325 = vmatpush2.bf16.msra.mxu0 0
    %326 = vmatprep.subr.bf16.mxu0 0
    %327 = vmatpush2.bf16.msra.mxu0 0
    %328 = vmatprep.mubr.bf16.mxu0 0
    %329 = vmatmul.mubr.bf16.gmra.mxu0 %v178
    %v330 = vpop.f32.mrf.mxu0
    %v331 = vadd.f32 %v234, %v330
    %v332 = vpop.f32.mrf.mxu0
    %v333 = vpop.f32.mrf.mxu0
    %v334 = vpop.f32.mrf.mxu0
    %335 = vdwg.mxu0
    %v336 = vmax.f32 %v331, 0.0
    %v337 = vpack.c.bf16 %v336, %v336
    %v354 = vunpack.c.l.b16 %v196
    %v355 = vunpack.c.l.b16 %v197
    %v356 = vunpack.c.l.b16 %v198
    %v357 = vunpack.c.l.b16 %v199
    %v358 = vunpack.c.l.b16 %v200
    %v359 = vunpack.c.l.b16 %v201
    %v360 = vunpack.c.l.b16 %v202
    %v361 = vunpack.c.l.b16 %v203
    %v362 = vunpack.c.l.b16 %v204
    %v363 = vunpack.c.l.b16 %v205
    %v364 = vunpack.c.l.b16 %v206
    %v365 = vunpack.c.l.b16 %v207
    %v366 = vunpack.c.l.b16 %v208
    %v367 = vunpack.c.l.b16 %v209
    %v368 = vunpack.c.l.b16 %v210
    %v369 = vunpack.c.l.b16 %v211
    %v370 = vpack.c.b16 %v355, %v354
    %v371 = vpack.c.b16 %v357, %v356
    %v372 = vpack.c.b16 %v359, %v358
    %v373 = vpack.c.b16 %v361, %v360
    %v374 = vpack.c.b16 %v363, %v362
    %v375 = vpack.c.b16 %v365, %v364
    %v376 = vpack.c.b16 %v367, %v366
    %v377 = vpack.c.b16 %v369, %v368
    %386 = vmatprep.subr.bf16.mxu0 0
    %387 = vmatpush1.bf16.msra.mxu0 %v377
    %388 = vmatprep.subr.bf16.mxu0 0
    %389 = vmatpush1.bf16.msra.mxu0 %v376
    %390 = vmatprep.subr.bf16.mxu0 0
    %391 = vmatpush1.bf16.msra.mxu0 %v375
    %392 = vmatprep.subr.bf16.mxu0 0
    %393 = vmatpush1.bf16.msra.mxu0 %v374
    %394 = vmatprep.subr.bf16.mxu0 0
    %395 = vmatpush1.bf16.msra.mxu0 %v373
    %396 = vmatprep.subr.bf16.mxu0 0
    %397 = vmatpush1.bf16.msra.mxu0 %v372
    %398 = vmatprep.subr.bf16.mxu0 0
    %399 = vmatpush1.bf16.msra.mxu0 %v371
    %400 = vmatprep.subr.bf16.mxu0 0
    %401 = vmatpush1.bf16.msra.mxu0 %v370
    %402 = vmatprep.subr.bf16.mxu0 0
    %403 = vmatpush2.bf16.msra.mxu0 0
    %404 = vmatprep.subr.bf16.mxu0 0
    %405 = vmatpush2.bf16.msra.mxu0 0
    %406 = vmatprep.subr.bf16.mxu0 0
    %407 = vmatpush2.bf16.msra.mxu0 0
    %408 = vmatprep.subr.bf16.mxu0 0
    %409 = vmatpush2.bf16.msra.mxu0 0
    %410 = vmatprep.subr.bf16.mxu0 0
    %411 = vmatpush2.bf16.msra.mxu0 0
    %412 = vmatprep.subr.bf16.mxu0 0
    %413 = vmatpush2.bf16.msra.mxu0 0
    %414 = vmatprep.subr.bf16.mxu0 0
    %415 = vmatpush2.bf16.msra.mxu0 0
    %416 = vmatprep.subr.bf16.mxu0 0
    %417 = vmatpush2.bf16.msra.mxu0 0
    %418 = vmatprep.mubr.bf16.mxu0 0
    %419 = vmatmul.mubr.bf16.gmra.mxu0 %v337
    %v420 = vpop.f32.mrf.mxu0
    %v421 = vadd.f32 %v240, %v420
    %v422 = vpop.f32.mrf.mxu0
    %v423 = vpop.f32.mrf.mxu0
    %v424 = vpop.f32.mrf.mxu0
    %425 = vdwg.mxu0
    %v442 = vunpack.c.l.b16 %v213
    %v443 = vunpack.c.l.b16 %v214
    %v444 = vunpack.c.l.b16 %v215
    %v445 = vunpack.c.l.b16 %v216
    %v446 = vunpack.c.l.b16 %v217
    %v447 = vunpack.c.l.b16 %v218
    %v448 = vunpack.c.l.b16 %v219
    %v449 = vunpack.c.l.b16 %v220
    %v450 = vunpack.c.l.b16 %v221
    %v451 = vunpack.c.l.b16 %v222
    %v452 = vunpack.c.l.b16 %v223
    %v453 = vunpack.c.l.b16 %v224
    %v454 = vunpack.c.l.b16 %v225
    %v455 = vunpack.c.l.b16 %v226
    %v456 = vunpack.c.l.b16 %v227
    %v457 = vunpack.c.l.b16 %v228
    %v458 = vpack.c.b16 %v443, %v442
    %v459 = vpack.c.b16 %v445, %v444
    %v460 = vpack.c.b16 %v447, %v446
    %v461 = vpack.c.b16 %v449, %v448
    %v462 = vpack.c.b16 %v451, %v450
    %v463 = vpack.c.b16 %v453, %v452
    %v464 = vpack.c.b16 %v455, %v454
    %v465 = vpack.c.b16 %v457, %v456
    %474 = vmatprep.subr.bf16.mxu0 0
    %475 = vmatpush1.bf16.msra.mxu0 %v465
    %476 = vmatprep.subr.bf16.mxu0 0
    %477 = vmatpush1.bf16.msra.mxu0 %v464
    %478 = vmatprep.subr.bf16.mxu0 0
    %479 = vmatpush1.bf16.msra.mxu0 %v463
    %480 = vmatprep.subr.bf16.mxu0 0
    %481 = vmatpush1.bf16.msra.mxu0 %v462
    %482 = vmatprep.subr.bf16.mxu0 0
    %483 = vmatpush1.bf16.msra.mxu0 %v461
    %484 = vmatprep.subr.bf16.mxu0 0
    %485 = vmatpush1.bf16.msra.mxu0 %v460
    %486 = vmatprep.subr.bf16.mxu0 0
    %487 = vmatpush1.bf16.msra.mxu0 %v459
    %488 = vmatprep.subr.bf16.mxu0 0
    %489 = vmatpush1.bf16.msra.mxu0 %v458
    %490 = vmatprep.subr.bf16.mxu0 0
    %491 = vmatpush2.bf16.msra.mxu0 0
    %492 = vmatprep.subr.bf16.mxu0 0
    %493 = vmatpush2.bf16.msra.mxu0 0
    %494 = vmatprep.subr.bf16.mxu0 0
    %495 = vmatpush2.bf16.msra.mxu0 0
    %496 = vmatprep.subr.bf16.mxu0 0
    %497 = vmatpush2.bf16.msra.mxu0 0
    %498 = vmatprep.subr.bf16.mxu0 0
    %499 = vmatpush2.bf16.msra.mxu0 0
    %500 = vmatprep.subr.bf16.mxu0 0
    %501 = vmatpush2.bf16.msra.mxu0 0
    %502 = vmatprep.subr.bf16.mxu0 0
    %503 = vmatpush2.bf16.msra.mxu0 0
    %504 = vmatprep.subr.bf16.mxu0 0
    %505 = vmatpush2.bf16.msra.mxu0 0
    %506 = vmatprep.mubr.bf16.mxu0 0
    %507 = vmatmul.mubr.bf16.gmra.mxu0 %v178
    %v508 = vpop.f32.mrf.mxu0
    %v509 = vadd.f32 %v246, %v508
    %v510 = vpop.f32.mrf.mxu0
    %v511 = vpop.f32.mrf.mxu0
    %v512 = vpop.f32.mrf.mxu0
    %513 = vdwg.mxu0
    %v514 = vadd.f32 %v421, %v509
    %v515 = vmax.f32 %v514, 0.0
    %v516 = vld [vmem:[#allocation10] sm:$0xf]
    %v517 = vld [vmem:[#allocation10 + $0x4] sm:$0xf]
    %v518 = vld [vmem:[#allocation10 + $0x8] sm:$0xf]
    %v519 = vld [vmem:[#allocation10 + $0xc] sm:$0xf]
    %v520 = vld [vmem:[#allocation10 + $0x10] sm:$0xf]
    %v521 = vld [vmem:[#allocation10 + $0x14] sm:$0xf]
    %v522 = vld [vmem:[#allocation10 + $0x18] sm:$0xf]
    %v523 = vld [vmem:[#allocation10 + $0x1c] sm:$0xf]
    %v524 = vld [vmem:[#allocation10 + $0x20] sm:$0xf]
    %v525 = vld [vmem:[#allocation10 + $0x24] sm:$0xf]
    %v526 = vld [vmem:[#allocation10 + $0x28] sm:$0xf]
    %v527 = vld [vmem:[#allocation10 + $0x2c] sm:$0xf]
    %v528 = vld [vmem:[#allocation10 + $0x30] sm:$0xf]
    %v529 = vld [vmem:[#allocation10 + $0x34] sm:$0xf]
    %v530 = vld [vmem:[#allocation10 + $0x38] sm:$0xf]
    %v531 = vld [vmem:[#allocation10 + $0x3c] sm:$0xf]
    %v532 = vld [vmem:[%s8] sm:$0x1]
    %v533 = vld [vmem:[#allocation11] sm:$0xf]
    %v534 = vld [vmem:[#allocation11 + $0x4] sm:$0xf]
    %v535 = vld [vmem:[#allocation11 + $0x8] sm:$0xf]
    %v536 = vld [vmem:[#allocation11 + $0xc] sm:$0xf]
    %v537 = vld [vmem:[#allocation11 + $0x10] sm:$0xf]
    %v538 = vld [vmem:[#allocation11 + $0x14] sm:$0xf]
    %v539 = vld [vmem:[#allocation11 + $0x18] sm:$0xf]
    %v540 = vld [vmem:[#allocation11 + $0x1c] sm:$0xf]
    %v541 = vld [vmem:[#allocation11 + $0x20] sm:$0xf]
    %v542 = vld [vmem:[#allocation11 + $0x24] sm:$0xf]
    %v543 = vld [vmem:[#allocation11 + $0x28] sm:$0xf]
    %v544 = vld [vmem:[#allocation11 + $0x2c] sm:$0xf]
    %v545 = vld [vmem:[#allocation11 + $0x30] sm:$0xf]
    %v546 = vld [vmem:[#allocation11 + $0x34] sm:$0xf]
    %v547 = vld [vmem:[#allocation11 + $0x38] sm:$0xf]
    %v548 = vld [vmem:[#allocation11 + $0x3c] sm:$0xf]
    %v549 = vld [vmem:[%s10] sm:$0x1]
    %v551 = vlaneseq
    %v552 = vshrl.u32 %v551, 7
    %v553 = vsub.s32 0, %v552
    %v554 = vrot.slane %v532, %v553
    %v557 = vlaneseq
    %v558 = vshrl.u32 %v557, 7
    %v559 = vsub.s32 0, %v558
    %v560 = vrot.slane %v549, %v559
    %v562 = vpack.c.bf16 %v515, %v515
    %v579 = vunpack.c.l.b16 %v516
    %v580 = vunpack.c.l.b16 %v517
    %v581 = vunpack.c.l.b16 %v518
    %v582 = vunpack.c.l.b16 %v519
    %v583 = vunpack.c.l.b16 %v520
    %v584 = vunpack.c.l.b16 %v521
    %v585 = vunpack.c.l.b16 %v522
    %v586 = vunpack.c.l.b16 %v523
    %v587 = vunpack.c.l.b16 %v524
    %v588 = vunpack.c.l.b16 %v525
    %v589 = vunpack.c.l.b16 %v526
    %v590 = vunpack.c.l.b16 %v527
    %v591 = vunpack.c.l.b16 %v528
    %v592 = vunpack.c.l.b16 %v529
    %v593 = vunpack.c.l.b16 %v530
    %v594 = vunpack.c.l.b16 %v531
    %v595 = vpack.c.b16 %v580, %v579
    %v596 = vpack.c.b16 %v582, %v581
    %v597 = vpack.c.b16 %v584, %v583
    %v598 = vpack.c.b16 %v586, %v585
    %v599 = vpack.c.b16 %v588, %v587
    %v600 = vpack.c.b16 %v590, %v589
    %v601 = vpack.c.b16 %v592, %v591
    %v602 = vpack.c.b16 %v594, %v593
    %611 = vmatprep.subr.bf16.mxu0 0
    %612 = vmatpush1.bf16.msra.mxu0 %v602
    %613 = vmatprep.subr.bf16.mxu0 0
    %614 = vmatpush1.bf16.msra.mxu0 %v601
    %615 = vmatprep.subr.bf16.mxu0 0
    %616 = vmatpush1.bf16.msra.mxu0 %v600
    %617 = vmatprep.subr.bf16.mxu0 0
    %618 = vmatpush1.bf16.msra.mxu0 %v599
    %619 = vmatprep.subr.bf16.mxu0 0
    %620 = vmatpush1.bf16.msra.mxu0 %v598
    %621 = vmatprep.subr.bf16.mxu0 0
    %622 = vmatpush1.bf16.msra.mxu0 %v597
    %623 = vmatprep.subr.bf16.mxu0 0
    %624 = vmatpush1.bf16.msra.mxu0 %v596
    %625 = vmatprep.subr.bf16.mxu0 0
    %626 = vmatpush1.bf16.msra.mxu0 %v595
    %627 = vmatprep.subr.bf16.mxu0 0
    %628 = vmatpush2.bf16.msra.mxu0 0
    %629 = vmatprep.subr.bf16.mxu0 0
    %630 = vmatpush2.bf16.msra.mxu0 0
    %631 = vmatprep.subr.bf16.mxu0 0
    %632 = vmatpush2.bf16.msra.mxu0 0
    %633 = vmatprep.subr.bf16.mxu0 0
    %634 = vmatpush2.bf16.msra.mxu0 0
    %635 = vmatprep.subr.bf16.mxu0 0
    %636 = vmatpush2.bf16.msra.mxu0 0
    %637 = vmatprep.subr.bf16.mxu0 0
    %638 = vmatpush2.bf16.msra.mxu0 0
    %639 = vmatprep.subr.bf16.mxu0 0
    %640 = vmatpush2.bf16.msra.mxu0 0
    %641 = vmatprep.subr.bf16.mxu0 0
    %642 = vmatpush2.bf16.msra.mxu0 0
    %643 = vmatprep.mubr.bf16.mxu0 0
    %644 = vmatmul.mubr.bf16.gmra.mxu0 %v562
    %v645 = vpop.f32.mrf.mxu0
    %v646 = vadd.f32 %v554, %v645
    %v647 = vpop.f32.mrf.mxu0
    %v648 = vpop.f32.mrf.mxu0
    %v649 = vpop.f32.mrf.mxu0
    %650 = vdwg.mxu0
    %v651 = vmax.f32 %v646, 0.0
    %v652 = vpack.c.bf16 %v651, %v651
    %v669 = vunpack.c.l.b16 %v533
    %v670 = vunpack.c.l.b16 %v534
    %v671 = vunpack.c.l.b16 %v535
    %v672 = vunpack.c.l.b16 %v536
    %v673 = vunpack.c.l.b16 %v537
    %v674 = vunpack.c.l.b16 %v538
    %v675 = vunpack.c.l.b16 %v539
    %v676 = vunpack.c.l.b16 %v540
    %v677 = vunpack.c.l.b16 %v541
    %v678 = vunpack.c.l.b16 %v542
    %v679 = vunpack.c.l.b16 %v543
    %v680 = vunpack.c.l.b16 %v544
    %v681 = vunpack.c.l.b16 %v545
    %v682 = vunpack.c.l.b16 %v546
    %v683 = vunpack.c.l.b16 %v547
    %v684 = vunpack.c.l.b16 %v548
    %v685 = vpack.c.b16 %v670, %v669
    %v686 = vpack.c.b16 %v672, %v671
    %v687 = vpack.c.b16 %v674, %v673
    %v688 = vpack.c.b16 %v676, %v675
    %v689 = vpack.c.b16 %v678, %v677
    %v690 = vpack.c.b16 %v680, %v679
    %v691 = vpack.c.b16 %v682, %v681
    %v692 = vpack.c.b16 %v684, %v683
    %701 = vmatprep.subr.bf16.mxu0 0
    %702 = vmatpush1.bf16.msra.mxu0 %v692
    %703 = vmatprep.subr.bf16.mxu0 0
    %704 = vmatpush1.bf16.msra.mxu0 %v691
    %705 = vmatprep.subr.bf16.mxu0 0
    %706 = vmatpush1.bf16.msra.mxu0 %v690
    %707 = vmatprep.subr.bf16.mxu0 0
    %708 = vmatpush1.bf16.msra.mxu0 %v689
    %709 = vmatprep.subr.bf16.mxu0 0
    %710 = vmatpush1.bf16.msra.mxu0 %v688
    %711 = vmatprep.subr.bf16.mxu0 0
    %712 = vmatpush1.bf16.msra.mxu0 %v687
    %713 = vmatprep.subr.bf16.mxu0 0
    %714 = vmatpush1.bf16.msra.mxu0 %v686
    %715 = vmatprep.subr.bf16.mxu0 0
    %716 = vmatpush1.bf16.msra.mxu0 %v685
    %717 = vmatprep.subr.bf16.mxu0 0
    %718 = vmatpush2.bf16.msra.mxu0 0
    %719 = vmatprep.subr.bf16.mxu0 0
    %720 = vmatpush2.bf16.msra.mxu0 0
    %721 = vmatprep.subr.bf16.mxu0 0
    %722 = vmatpush2.bf16.msra.mxu0 0
    %723 = vmatprep.subr.bf16.mxu0 0
    %724 = vmatpush2.bf16.msra.mxu0 0
    %725 = vmatprep.subr.bf16.mxu0 0
    %726 = vmatpush2.bf16.msra.mxu0 0
    %727 = vmatprep.subr.bf16.mxu0 0
    %728 = vmatpush2.bf16.msra.mxu0 0
    %729 = vmatprep.subr.bf16.mxu0 0
    %730 = vmatpush2.bf16.msra.mxu0 0
    %731 = vmatprep.subr.bf16.mxu0 0
    %732 = vmatpush2.bf16.msra.mxu0 0
    %733 = vmatprep.mubr.bf16.mxu0 0
    %734 = vmatmul.mubr.bf16.gmra.mxu0 %v652
    %v735 = vpop.f32.mrf.mxu0
    %v736 = vadd.f32 %v560, %v735
    %v737 = vpop.f32.mrf.mxu0
    %v738 = vpop.f32.mrf.mxu0
    %v739 = vpop.f32.mrf.mxu0
    %740 = vdwg.mxu0
    %v741 = vadd.f32 %v736, %v515
    %v742 = vmax.f32 %v741, 0.0
    %v743 = vpack.c.bf16 %v742, %v742
    %744 = vmatprep.subr.bf16.mxu0 0
    %745 = vmatpush1.bf16.msra.mxu0 %v602
    %746 = vmatprep.subr.bf16.mxu0 0
    %747 = vmatpush1.bf16.msra.mxu0 %v601
    %748 = vmatprep.subr.bf16.mxu0 0
    %749 = vmatpush1.bf16.msra.mxu0 %v600
    %750 = vmatprep.subr.bf16.mxu0 0
    %751 = vmatpush1.bf16.msra.mxu0 %v599
    %752 = vmatprep.subr.bf16.mxu0 0
    %753 = vmatpush1.bf16.msra.mxu0 %v598
    %754 = vmatprep.subr.bf16.mxu0 0
    %755 = vmatpush1.bf16.msra.mxu0 %v597
    %756 = vmatprep.subr.bf16.mxu0 0
    %757 = vmatpush1.bf16.msra.mxu0 %v596
    %758 = vmatprep.subr.bf16.mxu0 0
    %759 = vmatpush1.bf16.msra.mxu0 %v595
    %760 = vmatprep.subr.bf16.mxu0 0
    %761 = vmatpush2.bf16.msra.mxu0 0
    %762 = vmatprep.subr.bf16.mxu0 0
    %763 = vmatpush2.bf16.msra.mxu0 0
    %764 = vmatprep.subr.bf16.mxu0 0
    %765 = vmatpush2.bf16.msra.mxu0 0
    %766 = vmatprep.subr.bf16.mxu0 0
    %767 = vmatpush2.bf16.msra.mxu0 0
    %768 = vmatprep.subr.bf16.mxu0 0
    %769 = vmatpush2.bf16.msra.mxu0 0
    %770 = vmatprep.subr.bf16.mxu0 0
    %771 = vmatpush2.bf16.msra.mxu0 0
    %772 = vmatprep.subr.bf16.mxu0 0
    %773 = vmatpush2.bf16.msra.mxu0 0
    %774 = vmatprep.subr.bf16.mxu0 0
    %775 = vmatpush2.bf16.msra.mxu0 0
    %776 = vmatprep.mubr.bf16.mxu0 0
    %777 = vmatmul.mubr.bf16.gmra.mxu0 %v743
    %v778 = vpop.f32.mrf.mxu0
    %v779 = vadd.f32 %v554, %v778
    %v780 = vpop.f32.mrf.mxu0
    %v781 = vpop.f32.mrf.mxu0
    %v782 = vpop.f32.mrf.mxu0
    %783 = vdwg.mxu0
    %v784 = vmax.f32 %v779, 0.0
    %v785 = vpack.c.bf16 %v784, %v784
    %786 = vmatprep.subr.bf16.mxu0 0
    %787 = vmatpush1.bf16.msra.mxu0 %v692
    %788 = vmatprep.subr.bf16.mxu0 0
    %789 = vmatpush1.bf16.msra.mxu0 %v691
    %790 = vmatprep.subr.bf16.mxu0 0
    %791 = vmatpush1.bf16.msra.mxu0 %v690
    %792 = vmatprep.subr.bf16.mxu0 0
    %793 = vmatpush1.bf16.msra.mxu0 %v689
    %794 = vmatprep.subr.bf16.mxu0 0
    %795 = vmatpush1.bf16.msra.mxu0 %v688
    %796 = vmatprep.subr.bf16.mxu0 0
    %797 = vmatpush1.bf16.msra.mxu0 %v687
    %798 = vmatprep.subr.bf16.mxu0 0
    %799 = vmatpush1.bf16.msra.mxu0 %v686
    %800 = vmatprep.subr.bf16.mxu0 0
    %801 = vmatpush1.bf16.msra.mxu0 %v685
    %802 = vmatprep.subr.bf16.mxu0 0
    %803 = vmatpush2.bf16.msra.mxu0 0
    %804 = vmatprep.subr.bf16.mxu0 0
    %805 = vmatpush2.bf16.msra.mxu0 0
    %806 = vmatprep.subr.bf16.mxu0 0
    %807 = vmatpush2.bf16.msra.mxu0 0
    %808 = vmatprep.subr.bf16.mxu0 0
    %809 = vmatpush2.bf16.msra.mxu0 0
    %810 = vmatprep.subr.bf16.mxu0 0
    %811 = vmatpush2.bf16.msra.mxu0 0
    %812 = vmatprep.subr.bf16.mxu0 0
    %813 = vmatpush2.bf16.msra.mxu0 0
    %814 = vmatprep.subr.bf16.mxu0 0
    %815 = vmatpush2.bf16.msra.mxu0 0
    %816 = vmatprep.subr.bf16.mxu0 0
    %817 = vmatpush2.bf16.msra.mxu0 0
    %818 = vmatprep.mubr.bf16.mxu0 0
    %819 = vmatmul.mubr.bf16.gmra.mxu0 %v785
    %v820 = vpop.f32.mrf.mxu0
    %v821 = vadd.f32 %v560, %v820
    %v822 = vpop.f32.mrf.mxu0
    %v823 = vpop.f32.mrf.mxu0
    %v824 = vpop.f32.mrf.mxu0
    %825 = vdwg.mxu0
    %v826 = vadd.f32 %v821, %v742
    %v827 = vmax.f32 %v826, 0.0
    %v828 = vld [vmem:[#allocation13] sm:$0xf]
    %v829 = vld [vmem:[#allocation13 + $0x4] sm:$0xf]
    %v830 = vld [vmem:[#allocation13 + $0x8] sm:$0xf]
    %v831 = vld [vmem:[#allocation13 + $0xc] sm:$0xf]
    %v832 = vld [vmem:[#allocation13 + $0x10] sm:$0xf]
    %v833 = vld [vmem:[#allocation13 + $0x14] sm:$0xf]
    %v834 = vld [vmem:[#allocation13 + $0x18] sm:$0xf]
    %v835 = vld [vmem:[#allocation13 + $0x1c] sm:$0xf]
    %v836 = vld [vmem:[#allocation13 + $0x20] sm:$0xf]
    %v837 = vld [vmem:[#allocation13 + $0x24] sm:$0xf]
    %v838 = vld [vmem:[#allocation13 + $0x28] sm:$0xf]
    %v839 = vld [vmem:[#allocation13 + $0x2c] sm:$0xf]
    %v840 = vld [vmem:[#allocation13 + $0x30] sm:$0xf]
    %v841 = vld [vmem:[#allocation13 + $0x34] sm:$0xf]
    %v842 = vld [vmem:[#allocation13 + $0x38] sm:$0xf]
    %v843 = vld [vmem:[#allocation13 + $0x3c] sm:$0xf]
    %v844 = vld [vmem:[%s12] sm:$0x1]
    %v845 = vld [vmem:[#allocation14] sm:$0xf]
    %v846 = vld [vmem:[#allocation14 + $0x4] sm:$0xf]
    %v847 = vld [vmem:[#allocation14 + $0x8] sm:$0xf]
    %v848 = vld [vmem:[#allocation14 + $0xc] sm:$0xf]
    %v849 = vld [vmem:[#allocation14 + $0x10] sm:$0xf]
    %v850 = vld [vmem:[#allocation14 + $0x14] sm:$0xf]
    %v851 = vld [vmem:[#allocation14 + $0x18] sm:$0xf]
    %v852 = vld [vmem:[#allocation14 + $0x1c] sm:$0xf]
    %v853 = vld [vmem:[#allocation14 + $0x20] sm:$0xf]
    %v854 = vld [vmem:[#allocation14 + $0x24] sm:$0xf]
    %v855 = vld [vmem:[#allocation14 + $0x28] sm:$0xf]
    %v856 = vld [vmem:[#allocation14 + $0x2c] sm:$0xf]
    %v857 = vld [vmem:[#allocation14 + $0x30] sm:$0xf]
    %v858 = vld [vmem:[#allocation14 + $0x34] sm:$0xf]
    %v859 = vld [vmem:[#allocation14 + $0x38] sm:$0xf]
    %v860 = vld [vmem:[#allocation14 + $0x3c] sm:$0xf]
    %v861 = vld [vmem:[%s14] sm:$0x1]
    %v862 = vld [vmem:[#allocation16] sm:$0xf]
    %v863 = vld [vmem:[#allocation16 + $0x4] sm:$0xf]
    %v864 = vld [vmem:[#allocation16 + $0x8] sm:$0xf]
    %v865 = vld [vmem:[#allocation16 + $0xc] sm:$0xf]
    %v866 = vld [vmem:[#allocation16 + $0x10] sm:$0xf]
    %v867 = vld [vmem:[#allocation16 + $0x14] sm:$0xf]
    %v868 = vld [vmem:[#allocation16 + $0x18] sm:$0xf]
    %v869 = vld [vmem:[#allocation16 + $0x1c] sm:$0xf]
    %v870 = vld [vmem:[#allocation16 + $0x20] sm:$0xf]
    %v871 = vld [vmem:[#allocation16 + $0x24] sm:$0xf]
    %v872 = vld [vmem:[#allocation16 + $0x28] sm:$0xf]
    %v873 = vld [vmem:[#allocation16 + $0x2c] sm:$0xf]
    %v874 = vld [vmem:[#allocation16 + $0x30] sm:$0xf]
    %v875 = vld [vmem:[#allocation16 + $0x34] sm:$0xf]
    %v876 = vld [vmem:[#allocation16 + $0x38] sm:$0xf]
    %v877 = vld [vmem:[#allocation16 + $0x3c] sm:$0xf]
    %v878 = vld [vmem:[%s16] sm:$0x1]
    %v880 = vlaneseq
    %v881 = vshrl.u32 %v880, 7
    %v882 = vsub.s32 0, %v881
    %v883 = vrot.slane %v844, %v882
    %v886 = vlaneseq
    %v887 = vshrl.u32 %v886, 7
    %v888 = vsub.s32 0, %v887
    %v889 = vrot.slane %v861, %v888
    %v892 = vlaneseq
    %v893 = vshrl.u32 %v892, 7
    %v894 = vsub.s32 0, %v893
    %v895 = vrot.slane %v878, %v894
    %v897 = vpack.c.bf16 %v827, %v827
    %v914 = vunpack.c.l.b16 %v828
    %v915 = vunpack.c.l.b16 %v829
    %v916 = vunpack.c.l.b16 %v830
    %v917 = vunpack.c.l.b16 %v831
    %v918 = vunpack.c.l.b16 %v832
    %v919 = vunpack.c.l.b16 %v833
    %v920 = vunpack.c.l.b16 %v834
    %v921 = vunpack.c.l.b16 %v835
    %v922 = vunpack.c.l.b16 %v836
    %v923 = vunpack.c.l.b16 %v837
    %v924 = vunpack.c.l.b16 %v838
    %v925 = vunpack.c.l.b16 %v839
    %v926 = vunpack.c.l.b16 %v840
    %v927 = vunpack.c.l.b16 %v841
    %v928 = vunpack.c.l.b16 %v842
    %v929 = vunpack.c.l.b16 %v843
    %v930 = vpack.c.b16 %v915, %v914
    %v931 = vpack.c.b16 %v917, %v916
    %v932 = vpack.c.b16 %v919, %v918
    %v933 = vpack.c.b16 %v921, %v920
    %v934 = vpack.c.b16 %v923, %v922
    %v935 = vpack.c.b16 %v925, %v924
    %v936 = vpack.c.b16 %v927, %v926
    %v937 = vpack.c.b16 %v929, %v928
    %946 = vmatprep.subr.bf16.mxu0 0
    %947 = vmatpush1.bf16.msra.mxu0 %v937
    %948 = vmatprep.subr.bf16.mxu0 0
    %949 = vmatpush1.bf16.msra.mxu0 %v936
    %950 = vmatprep.subr.bf16.mxu0 0
    %951 = vmatpush1.bf16.msra.mxu0 %v935
    %952 = vmatprep.subr.bf16.mxu0 0
    %953 = vmatpush1.bf16.msra.mxu0 %v934
    %954 = vmatprep.subr.bf16.mxu0 0
    %955 = vmatpush1.bf16.msra.mxu0 %v933
    %956 = vmatprep.subr.bf16.mxu0 0
    %957 = vmatpush1.bf16.msra.mxu0 %v932
    %958 = vmatprep.subr.bf16.mxu0 0
    %959 = vmatpush1.bf16.msra.mxu0 %v931
    %960 = vmatprep.subr.bf16.mxu0 0
    %961 = vmatpush1.bf16.msra.mxu0 %v930
    %962 = vmatprep.subr.bf16.mxu0 0
    %963 = vmatpush2.bf16.msra.mxu0 0
    %964 = vmatprep.subr.bf16.mxu0 0
    %965 = vmatpush2.bf16.msra.mxu0 0
    %966 = vmatprep.subr.bf16.mxu0 0
    %967 = vmatpush2.bf16.msra.mxu0 0
    %968 = vmatprep.subr.bf16.mxu0 0
    %969 = vmatpush2.bf16.msra.mxu0 0
    %970 = vmatprep.subr.bf16.mxu0 0
    %971 = vmatpush2.bf16.msra.mxu0 0
    %972 = vmatprep.subr.bf16.mxu0 0
    %973 = vmatpush2.bf16.msra.mxu0 0
    %974 = vmatprep.subr.bf16.mxu0 0
    %975 = vmatpush2.bf16.msra.mxu0 0
    %976 = vmatprep.subr.bf16.mxu0 0
    %977 = vmatpush2.bf16.msra.mxu0 0
    %978 = vmatprep.mubr.bf16.mxu0 0
    %979 = vmatmul.mubr.bf16.gmra.mxu0 %v897
    %v980 = vpop.f32.mrf.mxu0
    %v981 = vadd.f32 %v883, %v980
    %v982 = vpop.f32.mrf.mxu0
    %v983 = vpop.f32.mrf.mxu0
    %v984 = vpop.f32.mrf.mxu0
    %985 = vdwg.mxu0
    %v986 = vmax.f32 %v981, 0.0
    %v987 = vpack.c.bf16 %v986, %v986
    %v1004 = vunpack.c.l.b16 %v845
    %v1005 = vunpack.c.l.b16 %v846
    %v1006 = vunpack.c.l.b16 %v847
    %v1007 = vunpack.c.l.b16 %v848
    %v1008 = vunpack.c.l.b16 %v849
    %v1009 = vunpack.c.l.b16 %v850
    %v1010 = vunpack.c.l.b16 %v851
    %v1011 = vunpack.c.l.b16 %v852
    %v1012 = vunpack.c.l.b16 %v853
    %v1013 = vunpack.c.l.b16 %v854
    %v1014 = vunpack.c.l.b16 %v855
    %v1015 = vunpack.c.l.b16 %v856
    %v1016 = vunpack.c.l.b16 %v857
    %v1017 = vunpack.c.l.b16 %v858
    %v1018 = vunpack.c.l.b16 %v859
    %v1019 = vunpack.c.l.b16 %v860
    %v1020 = vpack.c.b16 %v1005, %v1004
    %v1021 = vpack.c.b16 %v1007, %v1006
    %v1022 = vpack.c.b16 %v1009, %v1008
    %v1023 = vpack.c.b16 %v1011, %v1010
    %v1024 = vpack.c.b16 %v1013, %v1012
    %v1025 = vpack.c.b16 %v1015, %v1014
    %v1026 = vpack.c.b16 %v1017, %v1016
    %v1027 = vpack.c.b16 %v1019, %v1018
    %1036 = vmatprep.subr.bf16.mxu0 0
    %1037 = vmatpush1.bf16.msra.mxu0 %v1027
    %1038 = vmatprep.subr.bf16.mxu0 0
    %1039 = vmatpush1.bf16.msra.mxu0 %v1026
    %1040 = vmatprep.subr.bf16.mxu0 0
    %1041 = vmatpush1.bf16.msra.mxu0 %v1025
    %1042 = vmatprep.subr.bf16.mxu0 0
    %1043 = vmatpush1.bf16.msra.mxu0 %v1024
    %1044 = vmatprep.subr.bf16.mxu0 0
    %1045 = vmatpush1.bf16.msra.mxu0 %v1023
    %1046 = vmatprep.subr.bf16.mxu0 0
    %1047 = vmatpush1.bf16.msra.mxu0 %v1022
    %1048 = vmatprep.subr.bf16.mxu0 0
    %1049 = vmatpush1.bf16.msra.mxu0 %v1021
    %1050 = vmatprep.subr.bf16.mxu0 0
    %1051 = vmatpush1.bf16.msra.mxu0 %v1020
    %1052 = vmatprep.subr.bf16.mxu0 0
    %1053 = vmatpush2.bf16.msra.mxu0 0
    %1054 = vmatprep.subr.bf16.mxu0 0
    %1055 = vmatpush2.bf16.msra.mxu0 0
    %1056 = vmatprep.subr.bf16.mxu0 0
    %1057 = vmatpush2.bf16.msra.mxu0 0
    %1058 = vmatprep.subr.bf16.mxu0 0
    %1059 = vmatpush2.bf16.msra.mxu0 0
    %1060 = vmatprep.subr.bf16.mxu0 0
    %1061 = vmatpush2.bf16.msra.mxu0 0
    %1062 = vmatprep.subr.bf16.mxu0 0
    %1063 = vmatpush2.bf16.msra.mxu0 0
    %1064 = vmatprep.subr.bf16.mxu0 0
    %1065 = vmatpush2.bf16.msra.mxu0 0
    %1066 = vmatprep.subr.bf16.mxu0 0
    %1067 = vmatpush2.bf16.msra.mxu0 0
    %1068 = vmatprep.mubr.bf16.mxu0 0
    %1069 = vmatmul.mubr.bf16.gmra.mxu0 %v987
    %v1070 = vpop.f32.mrf.mxu0
    %v1071 = vadd.f32 %v889, %v1070
    %v1072 = vpop.f32.mrf.mxu0
    %v1073 = vpop.f32.mrf.mxu0
    %v1074 = vpop.f32.mrf.mxu0
    %1075 = vdwg.mxu0
    %v1092 = vunpack.c.l.b16 %v862
    %v1093 = vunpack.c.l.b16 %v863
    %v1094 = vunpack.c.l.b16 %v864
    %v1095 = vunpack.c.l.b16 %v865
    %v1096 = vunpack.c.l.b16 %v866
    %v1097 = vunpack.c.l.b16 %v867
    %v1098 = vunpack.c.l.b16 %v868
    %v1099 = vunpack.c.l.b16 %v869
    %v1100 = vunpack.c.l.b16 %v870
    %v1101 = vunpack.c.l.b16 %v871
    %v1102 = vunpack.c.l.b16 %v872
    %v1103 = vunpack.c.l.b16 %v873
    %v1104 = vunpack.c.l.b16 %v874
    %v1105 = vunpack.c.l.b16 %v875
    %v1106 = vunpack.c.l.b16 %v876
    %v1107 = vunpack.c.l.b16 %v877
    %v1108 = vpack.c.b16 %v1093, %v1092
    %v1109 = vpack.c.b16 %v1095, %v1094
    %v1110 = vpack.c.b16 %v1097, %v1096
    %v1111 = vpack.c.b16 %v1099, %v1098
    %v1112 = vpack.c.b16 %v1101, %v1100
    %v1113 = vpack.c.b16 %v1103, %v1102
    %v1114 = vpack.c.b16 %v1105, %v1104
    %v1115 = vpack.c.b16 %v1107, %v1106
    %1124 = vmatprep.subr.bf16.mxu0 0
    %1125 = vmatpush1.bf16.msra.mxu0 %v1115
    %1126 = vmatprep.subr.bf16.mxu0 0
    %1127 = vmatpush1.bf16.msra.mxu0 %v1114
    %1128 = vmatprep.subr.bf16.mxu0 0
    %1129 = vmatpush1.bf16.msra.mxu0 %v1113
    %1130 = vmatprep.subr.bf16.mxu0 0
    %1131 = vmatpush1.bf16.msra.mxu0 %v1112
    %1132 = vmatprep.subr.bf16.mxu0 0
    %1133 = vmatpush1.bf16.msra.mxu0 %v1111
    %1134 = vmatprep.subr.bf16.mxu0 0
    %1135 = vmatpush1.bf16.msra.mxu0 %v1110
    %1136 = vmatprep.subr.bf16.mxu0 0
    %1137 = vmatpush1.bf16.msra.mxu0 %v1109
    %1138 = vmatprep.subr.bf16.mxu0 0
    %1139 = vmatpush1.bf16.msra.mxu0 %v1108
    %1140 = vmatprep.subr.bf16.mxu0 0
    %1141 = vmatpush2.bf16.msra.mxu0 0
    %1142 = vmatprep.subr.bf16.mxu0 0
    %1143 = vmatpush2.bf16.msra.mxu0 0
    %1144 = vmatprep.subr.bf16.mxu0 0
    %1145 = vmatpush2.bf16.msra.mxu0 0
    %1146 = vmatprep.subr.bf16.mxu0 0
    %1147 = vmatpush2.bf16.msra.mxu0 0
    %1148 = vmatprep.subr.bf16.mxu0 0
    %1149 = vmatpush2.bf16.msra.mxu0 0
    %1150 = vmatprep.subr.bf16.mxu0 0
    %1151 = vmatpush2.bf16.msra.mxu0 0
    %1152 = vmatprep.subr.bf16.mxu0 0
    %1153 = vmatpush2.bf16.msra.mxu0 0
    %1154 = vmatprep.subr.bf16.mxu0 0
    %1155 = vmatpush2.bf16.msra.mxu0 0
    %1156 = vmatprep.mubr.bf16.mxu0 0
    %1157 = vmatmul.mubr.bf16.gmra.mxu0 %v897
    %v1158 = vpop.f32.mrf.mxu0
    %v1159 = vadd.f32 %v895, %v1158
    %v1160 = vpop.f32.mrf.mxu0
    %v1161 = vpop.f32.mrf.mxu0
    %v1162 = vpop.f32.mrf.mxu0
    %1163 = vdwg.mxu0
    %v1164 = vadd.f32 %v1071, %v1159
    %1165 = vst [vmem:[#allocation17] sm:$0xff] %v1164
    // Predicated region
    $region106: #{tpu_custom_call.1} parent=1 // pred_check
      _
    $region107: #{tpu_custom_call.1} parent=1 // pred_check_branch
      %1167 = sbr.rel (0) target = $region109
    $region108: #{tpu_custom_call.1} parent=1 // pred_region
      %s1169 = ssub.s32 128, 128
      %1170 = vsyncadd [#allocation4], %s1169
      %s1172 = sshll.u32 [#allocation17], 4
      %s1173 = int_to_ptr.vmem [resolvable:$true] %s1172
      %1175 = dma.vmem_to_hbm [thread:$0]  %s1173, 128, %s17, [#allocation4]
    $region109: #{tpu_custom_call.1} parent=1 // pred_fallthru
      _
    // Predicated region
    $region110: #{tpu_custom_call.1} parent=1 // pred_check
      _
    $region111: #{tpu_custom_call.1} parent=1 // pred_check_branch
      %1177 = sbr.rel (0) target = $region113
    $region112: #{tpu_custom_call.1} parent=1 // pred_region
      %1178 = dma.done [#allocation4], 128
    $region113: #{tpu_custom_call.1} parent=1 // pred_fallthru
      _
    %1179 = vsyncpa [#allocation3], 1
    %1180 = vsyncpa [#allocation6], 1
    %1181 = vsyncpa [#allocation9], 1
    %1182 = vsyncpa [#allocation12], 1
    %1183 = vsyncpa [#allocation15], 1
    %1184 = vsyncpa [#allocation4], 1

// kernel: tpu_custom_call.1
$region0: #{tpu_custom_call.1}
  #allocation0 [shape = 'u32[]', space=smem, size = 0x4, offset = 0x4, fixed_abs, tag = 'smem constant byte address 0x4 - core index']
  #allocation1 [shape = 'u32[144,128]{1,0:T(1,128)}', space=vmem, size = 0x12000, scoped, tag = 'internal scratch']
  %s0 = inlined_call_operand.hbm [shape: bf16[8,128], index: 0, kind: input, shape index: {}]
  %s1 = inlined_call_operand.hbm [shape: bf16[128,128], index: 1, kind: input, shape index: {}]
  %s2 = inlined_call_operand.vmem [shape: f32[1,128], index: 2, kind: input, shape index: {}]
  %s3 = inlined_call_operand.hbm [shape: bf16[128,128], index: 3, kind: input, shape index: {}]
  %s4 = inlined_call_operand.vmem [shape: f32[1,128], index: 4, kind: input, shape index: {}]
  %s5 = inlined_call_operand.hbm [shape: bf16[128,128], index: 5, kind: input, shape index: {}]
  %s6 = inlined_call_operand.vmem [shape: f32[1,128], index: 6, kind: input, shape index: {}]
  %s7 = inlined_call_operand.hbm [shape: bf16[128,128], index: 7, kind: input, shape index: {}]
  %s8 = inlined_call_operand.vmem [shape: f32[1,128], index: 8, kind: input, shape index: {}]
  %s9 = inlined_call_operand.hbm [shape: bf16[128,128], index: 9, kind: input, shape index: {}]
  %s10 = inlined_call_operand.vmem [shape: f32[1,128], index: 10, kind: input, shape index: {}]
  %s11 = inlined_call_operand.hbm [shape: bf16[128,128], index: 11, kind: input, shape index: {}]
  %s12 = inlined_call_operand.vmem [shape: f32[1,128], index: 12, kind: input, shape index: {}]
  %s13 = inlined_call_operand.hbm [shape: bf16[128,128], index: 13, kind: input, shape index: {}]
  %s14 = inlined_call_operand.vmem [shape: f32[1,128], index: 14, kind: input, shape index: {}]
  %s15 = inlined_call_operand.hbm [shape: bf16[128,128], index: 15, kind: input, shape index: {}]
  %s16 = inlined_call_operand.vmem [shape: f32[1,128], index: 16, kind: input, shape index: {}]
  %s17 = inlined_call_operand.hbm [shape: f32[8,128], index: 17, kind: output, shape index: {}]
  %s18 = sld [smem:[#allocation0]]
  $region114: #{tpu_custom_call.1} parent=0
    _
  %s20 = ssub.s32 1, %s18
  %s21 = scalar_select 0, %s20, %s18
  $region1: #{tpu_custom_call.1} parent=0
    #allocation2 [shape = 'u8[2048]{0}', space=vmem, size = 0x800, scoped, tag = 'input window, operand 0, single buffered']
    #allocation3 [shape = 's32[1]{0}', space=sflag, size = 0x4, scoped, tag = 'scoped memory for tpu_custom_call.1']
    #allocation4 [shape = 's32[1]{0}', space=sflag, size = 0x4, scoped, tag = 'scoped memory for tpu_custom_call.1']
    #allocation5 [shape = 'u8[32768]{0}', space=vmem, size = 0x8000, scoped, tag = 'input window, operand 1, single buffered']
    #allocation6 [shape = 's32[1]{0}', space=sflag, size = 0x4, scoped, tag = 'scoped memory for tpu_custom_call.1']
    #allocation7 [shape = 'u8[32768]{0}', space=vmem, size = 0x8000, scoped, tag = 'input window, operand 3, single buffered']
    #allocation8 [shape = 'u8[32768]{0}', space=vmem, size = 0x8000, scoped, tag = 'input window, operand 5, single buffered']
    #allocation9 [shape = 's32[1]{0}', space=sflag, size = 0x4, scoped, tag = 'scoped memory for tpu_custom_call.1']
    #allocation10 [shape = 'u8[32768]{0}', space=vmem, size = 0x8000, scoped, tag = 'input window, operand 7, single buffered']
    #allocation11 [shape = 'u8[32768]{0}', space=vmem, size = 0x8000, scoped, tag = 'input window, operand 9, single buffered']
    #allocation12 [shape = 's32[1]{0}', space=sflag, size = 0x4, scoped, tag = 'scoped memory for tpu_custom_call.1']
    #allocation13 [shape = 'u8[32768]{0}', space=vmem, size = 0x8000, scoped, tag = 'input window, operand 11, single buffered']
    #allocation14 [shape = 'u8[32768]{0}', space=vmem, size = 0x8000, scoped, tag = 'input window, operand 13, single buffered']
    #allocation15 [shape = 's32[1]{0}', space=sflag, size = 0x4, scoped, tag = 'scoped memory for tpu_custom_call.1']
    #allocation16 [shape = 'u8[32768]{0}', space=vmem, size = 0x8000, scoped, tag = 'input window, operand 15, single buffered']
    #allocation17 [shape = 'u8[4096]{0}', space=vmem, size = 0x1000, scoped, tag = 'output window, operand 0, single buffered']
    %22 = vsyncpa [#allocation3], 0
    %23 = vsyncpa [#allocation6], 0
    %24 = vsyncpa [#allocation9], 0
    %25 = vsyncpa [#allocation12], 0
    %26 = vsyncpa [#allocation15], 0
    %27 = vsyncpa [#allocation4], 0
    // Predicated region
    $region2: #{tpu_custom_call.1} parent=1 // pred_check
      _
    $region3: #{tpu_custom_call.1} parent=1 // pred_check_branch
      %29 = sbr.rel (0) target = $region5
    $region4: #{tpu_custom_call.1} parent=1 // pred_region
      %s31 = ssub.s32 64, 64
      %32 = vsyncadd [#allocation3], %s31
      %s34 = sshll.u32 [#allocation2], 4
      %s35 = int_to_ptr.vmem [resolvable:$true] %s34
      %37 = dma.hbm_to_vmem [thread:$0]  %s0, 64, %s35, [#allocation3]
    $region5: #{tpu_custom_call.1} parent=1 // pred_fallthru
      _
    // Predicated region
    $region6: #{tpu_custom_call.1} parent=1 // pred_check
      _
    $region7: #{tpu_custom_call.1} parent=1 // pred_check_branch
      %39 = sbr.rel (0) target = $region9
    $region8: #{tpu_custom_call.1} parent=1 // pred_region
      %s41 = ssub.s32 1024, 1024
      %42 = vsyncadd [#allocation6], %s41
      %s43 = sshll.u32 [#allocation5], 4
      %s44 = int_to_ptr.vmem [resolvable:$true] %s43
      %49 = dma.hbm_to_vmem [thread:$0]  %s1, 1024, %s44, [#allocation6], 64, 64, 4
    $region9: #{tpu_custom_call.1} parent=1 // pred_fallthru
      _
    // Predicated region
    $region10: #{tpu_custom_call.1} parent=1 // pred_check
      _
    $region11: #{tpu_custom_call.1} parent=1 // pred_check_branch
      %51 = sbr.rel (0) target = $region13
    $region12: #{tpu_custom_call.1} parent=1 // pred_region
      _
    $region13: #{tpu_custom_call.1} parent=1 // pred_fallthru
      _
    // Predicated region
    $region14: #{tpu_custom_call.1} parent=1 // pred_check
      _
    $region15: #{tpu_custom_call.1} parent=1 // pred_check_branch
      %53 = sbr.rel (0) target = $region17
    $region16: #{tpu_custom_call.1} parent=1 // pred_region
      %s55 = ssub.s32 1024, 1024
      %56 = vsyncadd [#allocation6], %s55
      %s57 = sshll.u32 [#allocation7], 4
      %s58 = int_to_ptr.vmem [resolvable:$true] %s57
      %63 = dma.hbm_to_vmem [thread:$0]  %s3, 1024, %s58, [#allocation6], 64, 64, 4
    $region17: #{tpu_custom_call.1} parent=1 // pred_fallthru
      _
    // Predicated region
    $region18: #{tpu_custom_call.1} parent=1 // pred_check
      _
    $region19: #{tpu_custom_call.1} parent=1 // pred_check_branch
      %65 = sbr.rel (0) target = $region21
    $region20: #{tpu_custom_call.1} parent=1 // pred_region
      _
    $region21: #{tpu_custom_call.1} parent=1 // pred_fallthru
      _
    // Predicated region
    $region22: #{tpu_custom_call.1} parent=1 // pred_check
      _
    $region23: #{tpu_custom_call.1} parent=1 // pred_check_branch
      %67 = sbr.rel (0) target = $region25
    $region24: #{tpu_custom_call.1} parent=1 // pred_region
      %s69 = ssub.s32 1024, 1024
      %70 = vsyncadd [#allocation9], %s69
      %s71 = sshll.u32 [#allocation8], 4
      %s72 = int_to_ptr.vmem [resolvable:$true] %s71
      %77 = dma.hbm_to_vmem [thread:$0]  %s5, 1024, %s72, [#allocation9], 64, 64, 4
    $region25: #{tpu_custom_call.1} parent=1 // pred_fallthru
      _
    // Predicated region
    $region26: #{tpu_custom_call.1} parent=1 // pred_check
      _
    $region27: #{tpu_custom_call.1} parent=1 // pred_check_branch
      %79 = sbr.rel (0) target = $region29
    $region28: #{tpu_custom_call.1} parent=1 // pred_region
      _
    $region29: #{tpu_custom_call.1} parent=1 // pred_fallthru
      _
    // Predicated region
    $region30: #{tpu_custom_call.1} parent=1 // pred_check
      _
    $region31: #{tpu_custom_call.1} parent=1 // pred_check_branch
      %81 = sbr.rel (0) target = $region33
    $region32: #{tpu_custom_call.1} parent=1 // pred_region
      %s83 = ssub.s32 1024, 1024
      %84 = vsyncadd [#allocation9], %s83
      %s85 = sshll.u32 [#allocation10], 4
      %s86 = int_to_ptr.vmem [resolvable:$true] %s85
      %91 = dma.hbm_to_vmem [thread:$0]  %s7, 1024, %s86, [#allocation9], 64, 64, 4
    $region33: #{tpu_custom_call.1} parent=1 // pred_fallthru
      _
    // Predicated region
    $region34: #{tpu_custom_call.1} parent=1 // pred_check
      _
    $region35: #{tpu_custom_call.1} parent=1 // pred_check_branch
      %93 = sbr.rel (0) target = $region37
    $region36: #{tpu_custom_call.1} parent=1 // pred_region
      _
    $region37: #{tpu_custom_call.1} parent=1 // pred_fallthru
      _
    // Predicated region
    $region38: #{tpu_custom_call.1} parent=1 // pred_check
      _
    $region39: #{tpu_custom_call.1} parent=1 // pred_check_branch
      %95 = sbr.rel (0) target = $region41
    $region40: #{tpu_custom_call.1} parent=1 // pred_region
      %s97 = ssub.s32 1024, 1024
      %98 = vsyncadd [#allocation12], %s97
      %s99 = sshll.u32 [#allocation11], 4
      %s100 = int_to_ptr.vmem [resolvable:$true] %s99
      %105 = dma.hbm_to_vmem [thread:$0]  %s9, 1024, %s100, [#allocation12], 64, 64, 4
    $region41: #{tpu_custom_call.1} parent=1 // pred_fallthru
      _
    // Predicated region
    $region42: #{tpu_custom_call.1} parent=1 // pred_check
      _
    $region43: #{tpu_custom_call.1} parent=1 // pred_check_branch
      %107 = sbr.rel (0) target = $region45
    $region44: #{tpu_custom_call.1} parent=1 // pred_region
      _
    $region45: #{tpu_custom_call.1} parent=1 // pred_fallthru
      _
    // Predicated region
    $region46: #{tpu_custom_call.1} parent=1 // pred_check
      _
    $region47: #{tpu_custom_call.1} parent=1 // pred_check_branch
      %109 = sbr.rel (0) target = $region49
    $region48: #{tpu_custom_call.1} parent=1 // pred_region
      %s111 = ssub.s32 1024, 1024
      %112 = vsyncadd [#allocation12], %s111
      %s113 = sshll.u32 [#allocation13], 4
      %s114 = int_to_ptr.vmem [resolvable:$true] %s113
      %119 = dma.hbm_to_vmem [thread:$0]  %s11, 1024, %s114, [#allocation12], 64, 64, 4
    $region49: #{tpu_custom_call.1} parent=1 // pred_fallthru
      _
    // Predicated region
    $region50: #{tpu_custom_call.1} parent=1 // pred_check
      _
    $region51: #{tpu_custom_call.1} parent=1 // pred_check_branch
      %121 = sbr.rel (0) target = $region53
    $region52: #{tpu_custom_call.1} parent=1 // pred_region
      _
    $region53: #{tpu_custom_call.1} parent=1 // pred_fallthru
      _
    // Predicated region
    $region54: #{tpu_custom_call.1} parent=1 // pred_check
      _
    $region55: #{tpu_custom_call.1} parent=1 // pred_check_branch
      %123 = sbr.rel (0) target = $region57
    $region56: #{tpu_custom_call.1} parent=1 // pred_region
      %s125 = ssub.s32 1024, 1024
      %126 = vsyncadd [#allocation15], %s125
      %s127 = sshll.u32 [#allocation14], 4
      %s128 = int_to_ptr.vmem [resolvable:$true] %s127
      %133 = dma.hbm_to_vmem [thread:$0]  %s13, 1024, %s128, [#allocation15], 64, 64, 4
    $region57: #{tpu_custom_call.1} parent=1 // pred_fallthru
      _
    // Predicated region
    $region58: #{tpu_custom_call.1} parent=1 // pred_check
      _
    $region59: #{tpu_custom_call.1} parent=1 // pred_check_branch
      %135 = sbr.rel (0) target = $region61
    $region60: #{tpu_custom_call.1} parent=1 // pred_region
      _
    $region61: #{tpu_custom_call.1} parent=1 // pred_fallthru
      _
    // Predicated region
    $region62: #{tpu_custom_call.1} parent=1 // pred_check
      _
    $region63: #{tpu_custom_call.1} parent=1 // pred_check_branch
      %137 = sbr.rel (0) target = $region65
    $region64: #{tpu_custom_call.1} parent=1 // pred_region
      %s139 = ssub.s32 1024, 1024
      %140 = vsyncadd [#allocation15], %s139
      %s141 = sshll.u32 [#allocation16], 4
      %s142 = int_to_ptr.vmem [resolvable:$true] %s141
      %147 = dma.hbm_to_vmem [thread:$0]  %s15, 1024, %s142, [#allocation15], 64, 64, 4
    $region65: #{tpu_custom_call.1} parent=1 // pred_fallthru
      _
    // Predicated region
    $region66: #{tpu_custom_call.1} parent=1 // pred_check
      _
    $region67: #{tpu_custom_call.1} parent=1 // pred_check_branch
      %149 = sbr.rel (0) target = $region69
    $region68: #{tpu_custom_call.1} parent=1 // pred_region
      _
    $region69: #{tpu_custom_call.1} parent=1 // pred_fallthru
      _
    // Predicated region
    $region70: #{tpu_custom_call.1} parent=1 // pred_check
      _
    $region71: #{tpu_custom_call.1} parent=1 // pred_check_branch
      %151 = sbr.rel (0) target = $region73
    $region72: #{tpu_custom_call.1} parent=1 // pred_region
      %152 = dma.done [#allocation3], 64
    $region73: #{tpu_custom_call.1} parent=1 // pred_fallthru
      _
    // Predicated region
    $region74: #{tpu_custom_call.1} parent=1 // pred_check
      _
    $region75: #{tpu_custom_call.1} parent=1 // pred_check_branch
      %154 = sbr.rel (0) target = $region77
    $region76: #{tpu_custom_call.1} parent=1 // pred_region
      %155 = dma.done [#allocation6], 1024
    $region77: #{tpu_custom_call.1} parent=1 // pred_fallthru
      _
    // Predicated region
    $region78: #{tpu_custom_call.1} parent=1 // pred_check
      _
    $region79: #{tpu_custom_call.1} parent=1 // pred_check_branch
      %157 = sbr.rel (0) target = $region81
    $region80: #{tpu_custom_call.1} parent=1 // pred_region
      %158 = dma.done [#allocation6], 1024
    $region81: #{tpu_custom_call.1} parent=1 // pred_fallthru
      _
    // Predicated region
    $region82: #{tpu_custom_call.1} parent=1 // pred_check
      _
    $region83: #{tpu_custom_call.1} parent=1 // pred_check_branch
      %160 = sbr.rel (0) target = $region85
    $region84: #{tpu_custom_call.1} parent=1 // pred_region
      %161 = dma.done [#allocation9], 1024
    $region85: #{tpu_custom_call.1} parent=1 // pred_fallthru
      _
    // Predicated region
    $region86: #{tpu_custom_call.1} parent=1 // pred_check
      _
    $region87: #{tpu_custom_call.1} parent=1 // pred_check_branch
      %163 = sbr.rel (0) target = $region89
    $region88: #{tpu_custom_call.1} parent=1 // pred_region
      %164 = dma.done [#allocation9], 1024
    $region89: #{tpu_custom_call.1} parent=1 // pred_fallthru
      _
    // Predicated region
    $region90: #{tpu_custom_call.1} parent=1 // pred_check
      _
    $region91: #{tpu_custom_call.1} parent=1 // pred_check_branch
      %166 = sbr.rel (0) target = $region93
    $region92: #{tpu_custom_call.1} parent=1 // pred_region
      %167 = dma.done [#allocation12], 1024
    $region93: #{tpu_custom_call.1} parent=1 // pred_fallthru
      _
    // Predicated region
    $region94: #{tpu_custom_call.1} parent=1 // pred_check
      _
    $region95: #{tpu_custom_call.1} parent=1 // pred_check_branch
      %169 = sbr.rel (0) target = $region97
    $region96: #{tpu_custom_call.1} parent=1 // pred_region
      %170 = dma.done [#allocation12], 1024
    $region97: #{tpu_custom_call.1} parent=1 // pred_fallthru
      _
    // Predicated region
    $region98: #{tpu_custom_call.1} parent=1 // pred_check
      _
    $region99: #{tpu_custom_call.1} parent=1 // pred_check_branch
      %172 = sbr.rel (0) target = $region101
    $region100: #{tpu_custom_call.1} parent=1 // pred_region
      %173 = dma.done [#allocation15], 1024
    $region101: #{tpu_custom_call.1} parent=1 // pred_fallthru
      _
    // Predicated region
    $region102: #{tpu_custom_call.1} parent=1 // pred_check
      _
    $region103: #{tpu_custom_call.1} parent=1 // pred_check_branch
      %175 = sbr.rel (0) target = $region105
    $region104: #{tpu_custom_call.1} parent=1 // pred_region
      %176 = dma.done [#allocation15], 1024
    $region105: #{tpu_custom_call.1} parent=1 // pred_fallthru
      _
    %v178 = vld [vmem:[#allocation2] sm:$0xf]
    %v179 = vld [vmem:[#allocation5] sm:$0xf]
    %v180 = vld [vmem:[#allocation5 + $0x4] sm:$0xf]
    %v181 = vld [vmem:[#allocation5 + $0x8] sm:$0xf]
    %v182 = vld [vmem:[#allocation5 + $0xc] sm:$0xf]
    %v183 = vld [vmem:[#allocation5 + $0x10] sm:$0xf]
    %v184 = vld [vmem:[#allocation5 + $0x14] sm:$0xf]
    %v185 = vld [vmem:[#allocation5 + $0x18] sm:$0xf]
    %v186 = vld [vmem:[#allocation5 + $0x1c] sm:$0xf]
    %v187 = vld [vmem:[#allocation5 + $0x20] sm:$0xf]
    %v188 = vld [vmem:[#allocation5 + $0x24] sm:$0xf]
    %v189 = vld [vmem:[#allocation5 + $0x28] sm:$0xf]
    %v190 = vld [vmem:[#allocation5 + $0x2c] sm:$0xf]
    %v191 = vld [vmem:[#allocation5 + $0x30] sm:$0xf]
    %v192 = vld [vmem:[#allocation5 + $0x34] sm:$0xf]
    %v193 = vld [vmem:[#allocation5 + $0x38] sm:$0xf]
    %v194 = vld [vmem:[#allocation5 + $0x3c] sm:$0xf]
    %v195 = vld [vmem:[%s2] sm:$0x1]
    %v196 = vld [vmem:[#allocation7] sm:$0xf]
    %v197 = vld [vmem:[#allocation7 + $0x4] sm:$0xf]
    %v198 = vld [vmem:[#allocation7 + $0x8] sm:$0xf]
    %v199 = vld [vmem:[#allocation7 + $0xc] sm:$0xf]
    %v200 = vld [vmem:[#allocation7 + $0x10] sm:$0xf]
    %v201 = vld [vmem:[#allocation7 + $0x14] sm:$0xf]
    %v202 = vld [vmem:[#allocation7 + $0x18] sm:$0xf]
    %v203 = vld [vmem:[#allocation7 + $0x1c] sm:$0xf]
    %v204 = vld [vmem:[#allocation7 + $0x20] sm:$0xf]
    %v205 = vld [vmem:[#allocation7 + $0x24] sm:$0xf]
    %v206 = vld [vmem:[#allocation7 + $0x28] sm:$0xf]
    %v207 = vld [vmem:[#allocation7 + $0x2c] sm:$0xf]
    %v208 = vld [vmem:[#allocation7 + $0x30] sm:$0xf]
    %v209 = vld [vmem:[#allocation7 + $0x34] sm:$0xf]
    %v210 = vld [vmem:[#allocation7 + $0x38] sm:$0xf]
    %v211 = vld [vmem:[#allocation7 + $0x3c] sm:$0xf]
    %v212 = vld [vmem:[%s4] sm:$0x1]
    %v213 = vld [vmem:[#allocation8] sm:$0xf]
    %v214 = vld [vmem:[#allocation8 + $0x4] sm:$0xf]
    %v215 = vld [vmem:[#allocation8 + $0x8] sm:$0xf]
    %v216 = vld [vmem:[#allocation8 + $0xc] sm:$0xf]
    %v217 = vld [vmem:[#allocation8 + $0x10] sm:$0xf]
    %v218 = vld [vmem:[#allocation8 + $0x14] sm:$0xf]
    %v219 = vld [vmem:[#allocation8 + $0x18] sm:$0xf]
    %v220 = vld [vmem:[#allocation8 + $0x1c] sm:$0xf]
    %v221 = vld [vmem:[#allocation8 + $0x20] sm:$0xf]
    %v222 = vld [vmem:[#allocation8 + $0x24] sm:$0xf]
    %v223 = vld [vmem:[#allocation8 + $0x28] sm:$0xf]
    %v224 = vld [vmem:[#allocation8 + $0x2c] sm:$0xf]
    %v225 = vld [vmem:[#allocation8 + $0x30] sm:$0xf]
    %v226 = vld [vmem:[#allocation8 + $0x34] sm:$0xf]
    %v227 = vld [vmem:[#allocation8 + $0x38] sm:$0xf]
    %v228 = vld [vmem:[#allocation8 + $0x3c] sm:$0xf]
    %v229 = vld [vmem:[%s6] sm:$0x1]
    %v231 = vlaneseq
    %v232 = vshrl.u32 %v231, 7
    %v233 = vsub.s32 0, %v232
    %v234 = vrot.slane %v195, %v233
    %v237 = vlaneseq
    %v238 = vshrl.u32 %v237, 7
    %v239 = vsub.s32 0, %v238
    %v240 = vrot.slane %v212, %v239
    %v243 = vlaneseq
    %v244 = vshrl.u32 %v243, 7
    %v245 = vsub.s32 0, %v244
    %v246 = vrot.slane %v229, %v245
    %v264 = vunpack.c.l.b16 %v179
    %v265 = vunpack.c.l.b16 %v180
    %v266 = vunpack.c.l.b16 %v181
    %v267 = vunpack.c.l.b16 %v182
    %v268 = vunpack.c.l.b16 %v183
    %v269 = vunpack.c.l.b16 %v184
    %v270 = vunpack.c.l.b16 %v185
    %v271 = vunpack.c.l.b16 %v186
    %v272 = vunpack.c.l.b16 %v187
    %v273 = vunpack.c.l.b16 %v188
    %v274 = vunpack.c.l.b16 %v189
    %v275 = vunpack.c.l.b16 %v190
    %v276 = vunpack.c.l.b16 %v191
    %v277 = vunpack.c.l.b16 %v192
    %v278 = vunpack.c.l.b16 %v193
    %v279 = vunpack.c.l.b16 %v194
    %v280 = vpack.c.b16 %v265, %v264
    %v281 = vpack.c.b16 %v267, %v266
    %v282 = vpack.c.b16 %v269, %v268
    %v283 = vpack.c.b16 %v271, %v270
    %v284 = vpack.c.b16 %v273, %v272
    %v285 = vpack.c.b16 %v275, %v274
    %v286 = vpack.c.b16 %v277, %v276
    %v287 = vpack.c.b16 %v279, %v278
    %296 = vmatprep.subr.bf16.mxu0 0
    %297 = vmatpush1.bf16.msra.mxu0 %v287
    %298 = vmatprep.subr.bf16.mxu0 0
    %299 = vmatpush1.bf16.msra.mxu0 %v286
    %300 = vmatprep.subr.bf16.mxu0 0
    %301 = vmatpush1.bf16.msra.mxu0 %v285
    %302 = vmatprep.subr.bf16.mxu0 0
    %303 = vmatpush1.bf16.msra.mxu0 %v284
    %304 = vmatprep.subr.bf16.mxu0 0
    %305 = vmatpush1.bf16.msra.mxu0 %v283
    %306 = vmatprep.subr.bf16.mxu0 0
    %307 = vmatpush1.bf16.msra.mxu0 %v282
    %308 = vmatprep.subr.bf16.mxu0 0
    %309 = vmatpush1.bf16.msra.mxu0 %v281
    %310 = vmatprep.subr.bf16.mxu0 0
    %311 = vmatpush1.bf16.msra.mxu0 %v280
    %312 = vmatprep.subr.bf16.mxu0 0
    %313 = vmatpush2.bf16.msra.mxu0 0
    %314 = vmatprep.subr.bf16.mxu0 0
    %315 = vmatpush2.bf16.msra.mxu0 0
    %316 = vmatprep.subr.bf16.mxu0 0
    %317 = vmatpush2.bf16.msra.mxu0 0
    %318 = vmatprep.subr.bf16.mxu0 0
    %319 = vmatpush2.bf16.msra.mxu0 0
    %320 = vmatprep.subr.bf16.mxu0 0
    %321 = vmatpush2.bf16.msra.mxu0 0
    %322 = vmatprep.subr.bf16.mxu0 0
    %323 = vmatpush2.bf16.msra.mxu0 0
    %324 = vmatprep.subr.bf16.mxu0 0
    %325 = vmatpush2.bf16.msra.mxu0 0
    %326 = vmatprep.subr.bf16.mxu0 0
    %327 = vmatpush2.bf16.msra.mxu0 0
    %328 = vmatprep.mubr.bf16.mxu0 0
    %329 = vmatmul.mubr.bf16.gmra.mxu0 %v178
    %v330 = vpop.f32.mrf.mxu0
    %v331 = vadd.f32 %v234, %v330
    %v332 = vpop.f32.mrf.mxu0
    %v333 = vpop.f32.mrf.mxu0
    %v334 = vpop.f32.mrf.mxu0
    %335 = vdwg.mxu0
    %v336 = vmax.f32 %v331, 0.0
    %v337 = vpack.c.bf16 %v336, %v336
    %v354 = vunpack.c.l.b16 %v196
    %v355 = vunpack.c.l.b16 %v197
    %v356 = vunpack.c.l.b16 %v198
    %v357 = vunpack.c.l.b16 %v199
    %v358 = vunpack.c.l.b16 %v200
    %v359 = vunpack.c.l.b16 %v201
    %v360 = vunpack.c.l.b16 %v202
    %v361 = vunpack.c.l.b16 %v203
    %v362 = vunpack.c.l.b16 %v204
    %v363 = vunpack.c.l.b16 %v205
    %v364 = vunpack.c.l.b16 %v206
    %v365 = vunpack.c.l.b16 %v207
    %v366 = vunpack.c.l.b16 %v208
    %v367 = vunpack.c.l.b16 %v209
    %v368 = vunpack.c.l.b16 %v210
    %v369 = vunpack.c.l.b16 %v211
    %v370 = vpack.c.b16 %v355, %v354
    %v371 = vpack.c.b16 %v357, %v356
    %v372 = vpack.c.b16 %v359, %v358
    %v373 = vpack.c.b16 %v361, %v360
    %v374 = vpack.c.b16 %v363, %v362
    %v375 = vpack.c.b16 %v365, %v364
    %v376 = vpack.c.b16 %v367, %v366
    %v377 = vpack.c.b16 %v369, %v368
    %386 = vmatprep.subr.bf16.mxu0 0
    %387 = vmatpush1.bf16.msra.mxu0 %v377
    %388 = vmatprep.subr.bf16.mxu0 0
    %389 = vmatpush1.bf16.msra.mxu0 %v376
    %390 = vmatprep.subr.bf16.mxu0 0
    %391 = vmatpush1.bf16.msra.mxu0 %v375
    %392 = vmatprep.subr.bf16.mxu0 0
    %393 = vmatpush1.bf16.msra.mxu0 %v374
    %394 = vmatprep.subr.bf16.mxu0 0
    %395 = vmatpush1.bf16.msra.mxu0 %v373
    %396 = vmatprep.subr.bf16.mxu0 0
    %397 = vmatpush1.bf16.msra.mxu0 %v372
    %398 = vmatprep.subr.bf16.mxu0 0
    %399 = vmatpush1.bf16.msra.mxu0 %v371
    %400 = vmatprep.subr.bf16.mxu0 0
    %401 = vmatpush1.bf16.msra.mxu0 %v370
    %402 = vmatprep.subr.bf16.mxu0 0
    %403 = vmatpush2.bf16.msra.mxu0 0
    %404 = vmatprep.subr.bf16.mxu0 0
    %405 = vmatpush2.bf16.msra.mxu0 0
    %406 = vmatprep.subr.bf16.mxu0 0
    %407 = vmatpush2.bf16.msra.mxu0 0
    %408 = vmatprep.subr.bf16.mxu0 0
    %409 = vmatpush2.bf16.msra.mxu0 0
    %410 = vmatprep.subr.bf16.mxu0 0
    %411 = vmatpush2.bf16.msra.mxu0 0
    %412 = vmatprep.subr.bf16.mxu0 0
    %413 = vmatpush2.bf16.msra.mxu0 0
    %414 = vmatprep.subr.bf16.mxu0 0
    %415 = vmatpush2.bf16.msra.mxu0 0
    %416 = vmatprep.subr.bf16.mxu0 0
    %417 = vmatpush2.bf16.msra.mxu0 0
    %418 = vmatprep.mubr.bf16.mxu0 0
    %419 = vmatmul.mubr.bf16.gmra.mxu0 %v337
    %v420 = vpop.f32.mrf.mxu0
    %v421 = vadd.f32 %v240, %v420
    %v422 = vpop.f32.mrf.mxu0
    %v423 = vpop.f32.mrf.mxu0
    %v424 = vpop.f32.mrf.mxu0
    %425 = vdwg.mxu0
    %v442 = vunpack.c.l.b16 %v213
    %v443 = vunpack.c.l.b16 %v214
    %v444 = vunpack.c.l.b16 %v215
    %v445 = vunpack.c.l.b16 %v216
    %v446 = vunpack.c.l.b16 %v217
    %v447 = vunpack.c.l.b16 %v218
    %v448 = vunpack.c.l.b16 %v219
    %v449 = vunpack.c.l.b16 %v220
    %v450 = vunpack.c.l.b16 %v221
    %v451 = vunpack.c.l.b16 %v222
    %v452 = vunpack.c.l.b16 %v223
    %v453 = vunpack.c.l.b16 %v224
    %v454 = vunpack.c.l.b16 %v225
    %v455 = vunpack.c.l.b16 %v226
    %v456 = vunpack.c.l.b16 %v227
    %v457 = vunpack.c.l.b16 %v228
    %v458 = vpack.c.b16 %v443, %v442
    %v459 = vpack.c.b16 %v445, %v444
    %v460 = vpack.c.b16 %v447, %v446
    %v461 = vpack.c.b16 %v449, %v448
    %v462 = vpack.c.b16 %v451, %v450
    %v463 = vpack.c.b16 %v453, %v452
    %v464 = vpack.c.b16 %v455, %v454
    %v465 = vpack.c.b16 %v457, %v456
    %474 = vmatprep.subr.bf16.mxu0 0
    %475 = vmatpush1.bf16.msra.mxu0 %v465
    %476 = vmatprep.subr.bf16.mxu0 0
    %477 = vmatpush1.bf16.msra.mxu0 %v464
    %478 = vmatprep.subr.bf16.mxu0 0
    %479 = vmatpush1.bf16.msra.mxu0 %v463
    %480 = vmatprep.subr.bf16.mxu0 0
    %481 = vmatpush1.bf16.msra.mxu0 %v462
    %482 = vmatprep.subr.bf16.mxu0 0
    %483 = vmatpush1.bf16.msra.mxu0 %v461
    %484 = vmatprep.subr.bf16.mxu0 0
    %485 = vmatpush1.bf16.msra.mxu0 %v460
    %486 = vmatprep.subr.bf16.mxu0 0
    %487 = vmatpush1.bf16.msra.mxu0 %v459
    %488 = vmatprep.subr.bf16.mxu0 0
    %489 = vmatpush1.bf16.msra.mxu0 %v458
    %490 = vmatprep.subr.bf16.mxu0 0
    %491 = vmatpush2.bf16.msra.mxu0 0
    %492 = vmatprep.subr.bf16.mxu0 0
    %493 = vmatpush2.bf16.msra.mxu0 0
    %494 = vmatprep.subr.bf16.mxu0 0
    %495 = vmatpush2.bf16.msra.mxu0 0
    %496 = vmatprep.subr.bf16.mxu0 0
    %497 = vmatpush2.bf16.msra.mxu0 0
    %498 = vmatprep.subr.bf16.mxu0 0
    %499 = vmatpush2.bf16.msra.mxu0 0
    %500 = vmatprep.subr.bf16.mxu0 0
    %501 = vmatpush2.bf16.msra.mxu0 0
    %502 = vmatprep.subr.bf16.mxu0 0
    %503 = vmatpush2.bf16.msra.mxu0 0
    %504 = vmatprep.subr.bf16.mxu0 0
    %505 = vmatpush2.bf16.msra.mxu0 0
    %506 = vmatprep.mubr.bf16.mxu0 0
    %507 = vmatmul.mubr.bf16.gmra.mxu0 %v178
    %v508 = vpop.f32.mrf.mxu0
    %v509 = vadd.f32 %v246, %v508
    %v510 = vpop.f32.mrf.mxu0
    %v511 = vpop.f32.mrf.mxu0
    %v512 = vpop.f32.mrf.mxu0
    %513 = vdwg.mxu0
    %v514 = vadd.f32 %v421, %v509
    %v515 = vmax.f32 %v514, 0.0
    %v516 = vld [vmem:[#allocation10] sm:$0xf]
    %v517 = vld [vmem:[#allocation10 + $0x4] sm:$0xf]
    %v518 = vld [vmem:[#allocation10 + $0x8] sm:$0xf]
    %v519 = vld [vmem:[#allocation10 + $0xc] sm:$0xf]
    %v520 = vld [vmem:[#allocation10 + $0x10] sm:$0xf]
    %v521 = vld [vmem:[#allocation10 + $0x14] sm:$0xf]
    %v522 = vld [vmem:[#allocation10 + $0x18] sm:$0xf]
    %v523 = vld [vmem:[#allocation10 + $0x1c] sm:$0xf]
    %v524 = vld [vmem:[#allocation10 + $0x20] sm:$0xf]
    %v525 = vld [vmem:[#allocation10 + $0x24] sm:$0xf]
    %v526 = vld [vmem:[#allocation10 + $0x28] sm:$0xf]
    %v527 = vld [vmem:[#allocation10 + $0x2c] sm:$0xf]
    %v528 = vld [vmem:[#allocation10 + $0x30] sm:$0xf]
    %v529 = vld [vmem:[#allocation10 + $0x34] sm:$0xf]
    %v530 = vld [vmem:[#allocation10 + $0x38] sm:$0xf]
    %v531 = vld [vmem:[#allocation10 + $0x3c] sm:$0xf]
    %v532 = vld [vmem:[%s8] sm:$0x1]
    %v533 = vld [vmem:[#allocation11] sm:$0xf]
    %v534 = vld [vmem:[#allocation11 + $0x4] sm:$0xf]
    %v535 = vld [vmem:[#allocation11 + $0x8] sm:$0xf]
    %v536 = vld [vmem:[#allocation11 + $0xc] sm:$0xf]
    %v537 = vld [vmem:[#allocation11 + $0x10] sm:$0xf]
    %v538 = vld [vmem:[#allocation11 + $0x14] sm:$0xf]
    %v539 = vld [vmem:[#allocation11 + $0x18] sm:$0xf]
    %v540 = vld [vmem:[#allocation11 + $0x1c] sm:$0xf]
    %v541 = vld [vmem:[#allocation11 + $0x20] sm:$0xf]
    %v542 = vld [vmem:[#allocation11 + $0x24] sm:$0xf]
    %v543 = vld [vmem:[#allocation11 + $0x28] sm:$0xf]
    %v544 = vld [vmem:[#allocation11 + $0x2c] sm:$0xf]
    %v545 = vld [vmem:[#allocation11 + $0x30] sm:$0xf]
    %v546 = vld [vmem:[#allocation11 + $0x34] sm:$0xf]
    %v547 = vld [vmem:[#allocation11 + $0x38] sm:$0xf]
    %v548 = vld [vmem:[#allocation11 + $0x3c] sm:$0xf]
    %v549 = vld [vmem:[%s10] sm:$0x1]
    %v551 = vlaneseq
    %v552 = vshrl.u32 %v551, 7
    %v553 = vsub.s32 0, %v552
    %v554 = vrot.slane %v532, %v553
    %v557 = vlaneseq
    %v558 = vshrl.u32 %v557, 7
    %v559 = vsub.s32 0, %v558
    %v560 = vrot.slane %v549, %v559
    %v562 = vpack.c.bf16 %v515, %v515
    %v579 = vunpack.c.l.b16 %v516
    %v580 = vunpack.c.l.b16 %v517
    %v581 = vunpack.c.l.b16 %v518
    %v582 = vunpack.c.l.b16 %v519
    %v583 = vunpack.c.l.b16 %v520
    %v584 = vunpack.c.l.b16 %v521
    %v585 = vunpack.c.l.b16 %v522
    %v586 = vunpack.c.l.b16 %v523
    %v587 = vunpack.c.l.b16 %v524
    %v588 = vunpack.c.l.b16 %v525
    %v589 = vunpack.c.l.b16 %v526
    %v590 = vunpack.c.l.b16 %v527
    %v591 = vunpack.c.l.b16 %v528
    %v592 = vunpack.c.l.b16 %v529
    %v593 = vunpack.c.l.b16 %v530
    %v594 = vunpack.c.l.b16 %v531
    %v595 = vpack.c.b16 %v580, %v579
    %v596 = vpack.c.b16 %v582, %v581
    %v597 = vpack.c.b16 %v584, %v583
    %v598 = vpack.c.b16 %v586, %v585
    %v599 = vpack.c.b16 %v588, %v587
    %v600 = vpack.c.b16 %v590, %v589
    %v601 = vpack.c.b16 %v592, %v591
    %v602 = vpack.c.b16 %v594, %v593
    %611 = vmatprep.subr.bf16.mxu0 0
    %612 = vmatpush1.bf16.msra.mxu0 %v602
    %613 = vmatprep.subr.bf16.mxu0 0
    %614 = vmatpush1.bf16.msra.mxu0 %v601
    %615 = vmatprep.subr.bf16.mxu0 0
    %616 = vmatpush1.bf16.msra.mxu0 %v600
    %617 = vmatprep.subr.bf16.mxu0 0
    %618 = vmatpush1.bf16.msra.mxu0 %v599
    %619 = vmatprep.subr.bf16.mxu0 0
    %620 = vmatpush1.bf16.msra.mxu0 %v598
    %621 = vmatprep.subr.bf16.mxu0 0
    %622 = vmatpush1.bf16.msra.mxu0 %v597
    %623 = vmatprep.subr.bf16.mxu0 0
    %624 = vmatpush1.bf16.msra.mxu0 %v596
    %625 = vmatprep.subr.bf16.mxu0 0
    %626 = vmatpush1.bf16.msra.mxu0 %v595
    %627 = vmatprep.subr.bf16.mxu0 0
    %628 = vmatpush2.bf16.msra.mxu0 0
    %629 = vmatprep.subr.bf16.mxu0 0
    %630 = vmatpush2.bf16.msra.mxu0 0
    %631 = vmatprep.subr.bf16.mxu0 0
    %632 = vmatpush2.bf16.msra.mxu0 0
    %633 = vmatprep.subr.bf16.mxu0 0
    %634 = vmatpush2.bf16.msra.mxu0 0
    %635 = vmatprep.subr.bf16.mxu0 0
    %636 = vmatpush2.bf16.msra.mxu0 0
    %637 = vmatprep.subr.bf16.mxu0 0
    %638 = vmatpush2.bf16.msra.mxu0 0
    %639 = vmatprep.subr.bf16.mxu0 0
    %640 = vmatpush2.bf16.msra.mxu0 0
    %641 = vmatprep.subr.bf16.mxu0 0
    %642 = vmatpush2.bf16.msra.mxu0 0
    %643 = vmatprep.mubr.bf16.mxu0 0
    %644 = vmatmul.mubr.bf16.gmra.mxu0 %v562
    %v645 = vpop.f32.mrf.mxu0
    %v646 = vadd.f32 %v554, %v645
    %v647 = vpop.f32.mrf.mxu0
    %v648 = vpop.f32.mrf.mxu0
    %v649 = vpop.f32.mrf.mxu0
    %650 = vdwg.mxu0
    %v651 = vmax.f32 %v646, 0.0
    %v652 = vpack.c.bf16 %v651, %v651
    %v669 = vunpack.c.l.b16 %v533
    %v670 = vunpack.c.l.b16 %v534
    %v671 = vunpack.c.l.b16 %v535
    %v672 = vunpack.c.l.b16 %v536
    %v673 = vunpack.c.l.b16 %v537
    %v674 = vunpack.c.l.b16 %v538
    %v675 = vunpack.c.l.b16 %v539
    %v676 = vunpack.c.l.b16 %v540
    %v677 = vunpack.c.l.b16 %v541
    %v678 = vunpack.c.l.b16 %v542
    %v679 = vunpack.c.l.b16 %v543
    %v680 = vunpack.c.l.b16 %v544
    %v681 = vunpack.c.l.b16 %v545
    %v682 = vunpack.c.l.b16 %v546
    %v683 = vunpack.c.l.b16 %v547
    %v684 = vunpack.c.l.b16 %v548
    %v685 = vpack.c.b16 %v670, %v669
    %v686 = vpack.c.b16 %v672, %v671
    %v687 = vpack.c.b16 %v674, %v673
    %v688 = vpack.c.b16 %v676, %v675
    %v689 = vpack.c.b16 %v678, %v677
    %v690 = vpack.c.b16 %v680, %v679
    %v691 = vpack.c.b16 %v682, %v681
    %v692 = vpack.c.b16 %v684, %v683
    %701 = vmatprep.subr.bf16.mxu0 0
    %702 = vmatpush1.bf16.msra.mxu0 %v692
    %703 = vmatprep.subr.bf16.mxu0 0
    %704 = vmatpush1.bf16.msra.mxu0 %v691
    %705 = vmatprep.subr.bf16.mxu0 0
    %706 = vmatpush1.bf16.msra.mxu0 %v690
    %707 = vmatprep.subr.bf16.mxu0 0
    %708 = vmatpush1.bf16.msra.mxu0 %v689
    %709 = vmatprep.subr.bf16.mxu0 0
    %710 = vmatpush1.bf16.msra.mxu0 %v688
    %711 = vmatprep.subr.bf16.mxu0 0
    %712 = vmatpush1.bf16.msra.mxu0 %v687
    %713 = vmatprep.subr.bf16.mxu0 0
    %714 = vmatpush1.bf16.msra.mxu0 %v686
    %715 = vmatprep.subr.bf16.mxu0 0
    %716 = vmatpush1.bf16.msra.mxu0 %v685
    %717 = vmatprep.subr.bf16.mxu0 0
    %718 = vmatpush2.bf16.msra.mxu0 0
    %719 = vmatprep.subr.bf16.mxu0 0
    %720 = vmatpush2.bf16.msra.mxu0 0
    %721 = vmatprep.subr.bf16.mxu0 0
    %722 = vmatpush2.bf16.msra.mxu0 0
    %723 = vmatprep.subr.bf16.mxu0 0
    %724 = vmatpush2.bf16.msra.mxu0 0
    %725 = vmatprep.subr.bf16.mxu0 0
    %726 = vmatpush2.bf16.msra.mxu0 0
    %727 = vmatprep.subr.bf16.mxu0 0
    %728 = vmatpush2.bf16.msra.mxu0 0
    %729 = vmatprep.subr.bf16.mxu0 0
    %730 = vmatpush2.bf16.msra.mxu0 0
    %731 = vmatprep.subr.bf16.mxu0 0
    %732 = vmatpush2.bf16.msra.mxu0 0
    %733 = vmatprep.mubr.bf16.mxu0 0
    %734 = vmatmul.mubr.bf16.gmra.mxu0 %v652
    %v735 = vpop.f32.mrf.mxu0
    %v736 = vadd.f32 %v560, %v735
    %v737 = vpop.f32.mrf.mxu0
    %v738 = vpop.f32.mrf.mxu0
    %v739 = vpop.f32.mrf.mxu0
    %740 = vdwg.mxu0
    %v741 = vadd.f32 %v736, %v515
    %v742 = vmax.f32 %v741, 0.0
    %v743 = vpack.c.bf16 %v742, %v742
    %744 = vmatprep.subr.bf16.mxu0 0
    %745 = vmatpush1.bf16.msra.mxu0 %v602
    %746 = vmatprep.subr.bf16.mxu0 0
    %747 = vmatpush1.bf16.msra.mxu0 %v601
    %748 = vmatprep.subr.bf16.mxu0 0
    %749 = vmatpush1.bf16.msra.mxu0 %v600
    %750 = vmatprep.subr.bf16.mxu0 0
    %751 = vmatpush1.bf16.msra.mxu0 %v599
    %752 = vmatprep.subr.bf16.mxu0 0
    %753 = vmatpush1.bf16.msra.mxu0 %v598
    %754 = vmatprep.subr.bf16.mxu0 0
    %755 = vmatpush1.bf16.msra.mxu0 %v597
    %756 = vmatprep.subr.bf16.mxu0 0
    %757 = vmatpush1.bf16.msra.mxu0 %v596
    %758 = vmatprep.subr.bf16.mxu0 0
    %759 = vmatpush1.bf16.msra.mxu0 %v595
    %760 = vmatprep.subr.bf16.mxu0 0
    %761 = vmatpush2.bf16.msra.mxu0 0
    %762 = vmatprep.subr.bf16.mxu0 0
    %763 = vmatpush2.bf16.msra.mxu0 0
    %764 = vmatprep.subr.bf16.mxu0 0
    %765 = vmatpush2.bf16.msra.mxu0 0
    %766 = vmatprep.subr.bf16.mxu0 0
    %767 = vmatpush2.bf16.msra.mxu0 0
    %768 = vmatprep.subr.bf16.mxu0 0
    %769 = vmatpush2.bf16.msra.mxu0 0
    %770 = vmatprep.subr.bf16.mxu0 0
    %771 = vmatpush2.bf16.msra.mxu0 0
    %772 = vmatprep.subr.bf16.mxu0 0
    %773 = vmatpush2.bf16.msra.mxu0 0
    %774 = vmatprep.subr.bf16.mxu0 0
    %775 = vmatpush2.bf16.msra.mxu0 0
    %776 = vmatprep.mubr.bf16.mxu0 0
    %777 = vmatmul.mubr.bf16.gmra.mxu0 %v743
    %v778 = vpop.f32.mrf.mxu0
    %v779 = vadd.f32 %v554, %v778
    %v780 = vpop.f32.mrf.mxu0
    %v781 = vpop.f32.mrf.mxu0
    %v782 = vpop.f32.mrf.mxu0
    %783 = vdwg.mxu0
    %v784 = vmax.f32 %v779, 0.0
    %v785 = vpack.c.bf16 %v784, %v784
    %786 = vmatprep.subr.bf16.mxu0 0
    %787 = vmatpush1.bf16.msra.mxu0 %v692
    %788 = vmatprep.subr.bf16.mxu0 0
    %789 = vmatpush1.bf16.msra.mxu0 %v691
    %790 = vmatprep.subr.bf16.mxu0 0
    %791 = vmatpush1.bf16.msra.mxu0 %v690
    %792 = vmatprep.subr.bf16.mxu0 0
    %793 = vmatpush1.bf16.msra.mxu0 %v689
    %794 = vmatprep.subr.bf16.mxu0 0
    %795 = vmatpush1.bf16.msra.mxu0 %v688
    %796 = vmatprep.subr.bf16.mxu0 0
    %797 = vmatpush1.bf16.msra.mxu0 %v687
    %798 = vmatprep.subr.bf16.mxu0 0
    %799 = vmatpush1.bf16.msra.mxu0 %v686
    %800 = vmatprep.subr.bf16.mxu0 0
    %801 = vmatpush1.bf16.msra.mxu0 %v685
    %802 = vmatprep.subr.bf16.mxu0 0
    %803 = vmatpush2.bf16.msra.mxu0 0
    %804 = vmatprep.subr.bf16.mxu0 0
    %805 = vmatpush2.bf16.msra.mxu0 0
    %806 = vmatprep.subr.bf16.mxu0 0
    %807 = vmatpush2.bf16.msra.mxu0 0
    %808 = vmatprep.subr.bf16.mxu0 0
    %809 = vmatpush2.bf16.msra.mxu0 0
    %810 = vmatprep.subr.bf16.mxu0 0
    %811 = vmatpush2.bf16.msra.mxu0 0
    %812 = vmatprep.subr.bf16.mxu0 0
    %813 = vmatpush2.bf16.msra.mxu0 0
    %814 = vmatprep.subr.bf16.mxu0 0
    %815 = vmatpush2.bf16.msra.mxu0 0
    %816 = vmatprep.subr.bf16.mxu0 0
    %817 = vmatpush2.bf16.msra.mxu0 0
    %818 = vmatprep.mubr.bf16.mxu0 0
    %819 = vmatmul.mubr.bf16.gmra.mxu0 %v785
    %v820 = vpop.f32.mrf.mxu0
    %v821 = vadd.f32 %v560, %v820
    %v822 = vpop.f32.mrf.mxu0
    %v823 = vpop.f32.mrf.mxu0
    %v824 = vpop.f32.mrf.mxu0
    %825 = vdwg.mxu0
    %v826 = vadd.f32 %v821, %v742
    %v827 = vmax.f32 %v826, 0.0
    %v828 = vld [vmem:[#allocation13] sm:$0xf]
    %v829 = vld [vmem:[#allocation13 + $0x4] sm:$0xf]
    %v830 = vld [vmem:[#allocation13 + $0x8] sm:$0xf]
    %v831 = vld [vmem:[#allocation13 + $0xc] sm:$0xf]
    %v832 = vld [vmem:[#allocation13 + $0x10] sm:$0xf]
    %v833 = vld [vmem:[#allocation13 + $0x14] sm:$0xf]
    %v834 = vld [vmem:[#allocation13 + $0x18] sm:$0xf]
    %v835 = vld [vmem:[#allocation13 + $0x1c] sm:$0xf]
    %v836 = vld [vmem:[#allocation13 + $0x20] sm:$0xf]
    %v837 = vld [vmem:[#allocation13 + $0x24] sm:$0xf]
    %v838 = vld [vmem:[#allocation13 + $0x28] sm:$0xf]
    %v839 = vld [vmem:[#allocation13 + $0x2c] sm:$0xf]
    %v840 = vld [vmem:[#allocation13 + $0x30] sm:$0xf]
    %v841 = vld [vmem:[#allocation13 + $0x34] sm:$0xf]
    %v842 = vld [vmem:[#allocation13 + $0x38] sm:$0xf]
    %v843 = vld [vmem:[#allocation13 + $0x3c] sm:$0xf]
    %v844 = vld [vmem:[%s12] sm:$0x1]
    %v845 = vld [vmem:[#allocation14] sm:$0xf]
    %v846 = vld [vmem:[#allocation14 + $0x4] sm:$0xf]
    %v847 = vld [vmem:[#allocation14 + $0x8] sm:$0xf]
    %v848 = vld [vmem:[#allocation14 + $0xc] sm:$0xf]
    %v849 = vld [vmem:[#allocation14 + $0x10] sm:$0xf]
    %v850 = vld [vmem:[#allocation14 + $0x14] sm:$0xf]
    %v851 = vld [vmem:[#allocation14 + $0x18] sm:$0xf]
    %v852 = vld [vmem:[#allocation14 + $0x1c] sm:$0xf]
    %v853 = vld [vmem:[#allocation14 + $0x20] sm:$0xf]
    %v854 = vld [vmem:[#allocation14 + $0x24] sm:$0xf]
    %v855 = vld [vmem:[#allocation14 + $0x28] sm:$0xf]
    %v856 = vld [vmem:[#allocation14 + $0x2c] sm:$0xf]
    %v857 = vld [vmem:[#allocation14 + $0x30] sm:$0xf]
    %v858 = vld [vmem:[#allocation14 + $0x34] sm:$0xf]
    %v859 = vld [vmem:[#allocation14 + $0x38] sm:$0xf]
    %v860 = vld [vmem:[#allocation14 + $0x3c] sm:$0xf]
    %v861 = vld [vmem:[%s14] sm:$0x1]
    %v862 = vld [vmem:[#allocation16] sm:$0xf]
    %v863 = vld [vmem:[#allocation16 + $0x4] sm:$0xf]
    %v864 = vld [vmem:[#allocation16 + $0x8] sm:$0xf]
    %v865 = vld [vmem:[#allocation16 + $0xc] sm:$0xf]
    %v866 = vld [vmem:[#allocation16 + $0x10] sm:$0xf]
    %v867 = vld [vmem:[#allocation16 + $0x14] sm:$0xf]
    %v868 = vld [vmem:[#allocation16 + $0x18] sm:$0xf]
    %v869 = vld [vmem:[#allocation16 + $0x1c] sm:$0xf]
    %v870 = vld [vmem:[#allocation16 + $0x20] sm:$0xf]
    %v871 = vld [vmem:[#allocation16 + $0x24] sm:$0xf]
    %v872 = vld [vmem:[#allocation16 + $0x28] sm:$0xf]
    %v873 = vld [vmem:[#allocation16 + $0x2c] sm:$0xf]
    %v874 = vld [vmem:[#allocation16 + $0x30] sm:$0xf]
    %v875 = vld [vmem:[#allocation16 + $0x34] sm:$0xf]
    %v876 = vld [vmem:[#allocation16 + $0x38] sm:$0xf]
    %v877 = vld [vmem:[#allocation16 + $0x3c] sm:$0xf]
    %v878 = vld [vmem:[%s16] sm:$0x1]
    %v880 = vlaneseq
    %v881 = vshrl.u32 %v880, 7
    %v882 = vsub.s32 0, %v881
    %v883 = vrot.slane %v844, %v882
    %v886 = vlaneseq
    %v887 = vshrl.u32 %v886, 7
    %v888 = vsub.s32 0, %v887
    %v889 = vrot.slane %v861, %v888
    %v892 = vlaneseq
    %v893 = vshrl.u32 %v892, 7
    %v894 = vsub.s32 0, %v893
    %v895 = vrot.slane %v878, %v894
    %v897 = vpack.c.bf16 %v827, %v827
    %v914 = vunpack.c.l.b16 %v828
    %v915 = vunpack.c.l.b16 %v829
    %v916 = vunpack.c.l.b16 %v830
    %v917 = vunpack.c.l.b16 %v831
    %v918 = vunpack.c.l.b16 %v832
    %v919 = vunpack.c.l.b16 %v833
    %v920 = vunpack.c.l.b16 %v834
    %v921 = vunpack.c.l.b16 %v835
    %v922 = vunpack.c.l.b16 %v836
    %v923 = vunpack.c.l.b16 %v837
    %v924 = vunpack.c.l.b16 %v838
    %v925 = vunpack.c.l.b16 %v839
    %v926 = vunpack.c.l.b16 %v840
    %v927 = vunpack.c.l.b16 %v841
    %v928 = vunpack.c.l.b16 %v842
    %v929 = vunpack.c.l.b16 %v843
    %v930 = vpack.c.b16 %v915, %v914
    %v931 = vpack.c.b16 %v917, %v916
    %v932 = vpack.c.b16 %v919, %v918
    %v933 = vpack.c.b16 %v921, %v920
    %v934 = vpack.c.b16 %v923, %v922
    %v935 = vpack.c.b16 %v925, %v924
    %v936 = vpack.c.b16 %v927, %v926
    %v937 = vpack.c.b16 %v929, %v928
    %946 = vmatprep.subr.bf16.mxu0 0
    %947 = vmatpush1.bf16.msra.mxu0 %v937
    %948 = vmatprep.subr.bf16.mxu0 0
    %949 = vmatpush1.bf16.msra.mxu0 %v936
    %950 = vmatprep.subr.bf16.mxu0 0
    %951 = vmatpush1.bf16.msra.mxu0 %v935
    %952 = vmatprep.subr.bf16.mxu0 0
    %953 = vmatpush1.bf16.msra.mxu0 %v934
    %954 = vmatprep.subr.bf16.mxu0 0
    %955 = vmatpush1.bf16.msra.mxu0 %v933
    %956 = vmatprep.subr.bf16.mxu0 0
    %957 = vmatpush1.bf16.msra.mxu0 %v932
    %958 = vmatprep.subr.bf16.mxu0 0
    %959 = vmatpush1.bf16.msra.mxu0 %v931
    %960 = vmatprep.subr.bf16.mxu0 0
    %961 = vmatpush1.bf16.msra.mxu0 %v930
    %962 = vmatprep.subr.bf16.mxu0 0
    %963 = vmatpush2.bf16.msra.mxu0 0
    %964 = vmatprep.subr.bf16.mxu0 0
    %965 = vmatpush2.bf16.msra.mxu0 0
    %966 = vmatprep.subr.bf16.mxu0 0
    %967 = vmatpush2.bf16.msra.mxu0 0
    %968 = vmatprep.subr.bf16.mxu0 0
    %969 = vmatpush2.bf16.msra.mxu0 0
    %970 = vmatprep.subr.bf16.mxu0 0
    %971 = vmatpush2.bf16.msra.mxu0 0
    %972 = vmatprep.subr.bf16.mxu0 0
    %973 = vmatpush2.bf16.msra.mxu0 0
    %974 = vmatprep.subr.bf16.mxu0 0
    %975 = vmatpush2.bf16.msra.mxu0 0
    %976 = vmatprep.subr.bf16.mxu0 0
    %977 = vmatpush2.bf16.msra.mxu0 0
    %978 = vmatprep.mubr.bf16.mxu0 0
    %979 = vmatmul.mubr.bf16.gmra.mxu0 %v897
    %v980 = vpop.f32.mrf.mxu0
    %v981 = vadd.f32 %v883, %v980
    %v982 = vpop.f32.mrf.mxu0
    %v983 = vpop.f32.mrf.mxu0
    %v984 = vpop.f32.mrf.mxu0
    %985 = vdwg.mxu0
    %v986 = vmax.f32 %v981, 0.0
    %v987 = vpack.c.bf16 %v986, %v986
    %v1004 = vunpack.c.l.b16 %v845
    %v1005 = vunpack.c.l.b16 %v846
    %v1006 = vunpack.c.l.b16 %v847
    %v1007 = vunpack.c.l.b16 %v848
    %v1008 = vunpack.c.l.b16 %v849
    %v1009 = vunpack.c.l.b16 %v850
    %v1010 = vunpack.c.l.b16 %v851
    %v1011 = vunpack.c.l.b16 %v852
    %v1012 = vunpack.c.l.b16 %v853
    %v1013 = vunpack.c.l.b16 %v854
    %v1014 = vunpack.c.l.b16 %v855
    %v1015 = vunpack.c.l.b16 %v856
    %v1016 = vunpack.c.l.b16 %v857
    %v1017 = vunpack.c.l.b16 %v858
    %v1018 = vunpack.c.l.b16 %v859
    %v1019 = vunpack.c.l.b16 %v860
    %v1020 = vpack.c.b16 %v1005, %v1004
    %v1021 = vpack.c.b16 %v1007, %v1006
    %v1022 = vpack.c.b16 %v1009, %v1008
    %v1023 = vpack.c.b16 %v1011, %v1010
    %v1024 = vpack.c.b16 %v1013, %v1012
    %v1025 = vpack.c.b16 %v1015, %v1014
    %v1026 = vpack.c.b16 %v1017, %v1016
    %v1027 = vpack.c.b16 %v1019, %v1018
    %1036 = vmatprep.subr.bf16.mxu0 0
    %1037 = vmatpush1.bf16.msra.mxu0 %v1027
    %1038 = vmatprep.subr.bf16.mxu0 0
    %1039 = vmatpush1.bf16.msra.mxu0 %v1026
    %1040 = vmatprep.subr.bf16.mxu0 0
    %1041 = vmatpush1.bf16.msra.mxu0 %v1025
    %1042 = vmatprep.subr.bf16.mxu0 0
    %1043 = vmatpush1.bf16.msra.mxu0 %v1024
    %1044 = vmatprep.subr.bf16.mxu0 0
    %1045 = vmatpush1.bf16.msra.mxu0 %v1023
    %1046 = vmatprep.subr.bf16.mxu0 0
    %1047 = vmatpush1.bf16.msra.mxu0 %v1022
    %1048 = vmatprep.subr.bf16.mxu0 0
    %1049 = vmatpush1.bf16.msra.mxu0 %v1021
    %1050 = vmatprep.subr.bf16.mxu0 0
    %1051 = vmatpush1.bf16.msra.mxu0 %v1020
    %1052 = vmatprep.subr.bf16.mxu0 0
    %1053 = vmatpush2.bf16.msra.mxu0 0
    %1054 = vmatprep.subr.bf16.mxu0 0
    %1055 = vmatpush2.bf16.msra.mxu0 0
    %1056 = vmatprep.subr.bf16.mxu0 0
    %1057 = vmatpush2.bf16.msra.mxu0 0
    %1058 = vmatprep.subr.bf16.mxu0 0
    %1059 = vmatpush2.bf16.msra.mxu0 0
    %1060 = vmatprep.subr.bf16.mxu0 0
    %1061 = vmatpush2.bf16.msra.mxu0 0
    %1062 = vmatprep.subr.bf16.mxu0 0
    %1063 = vmatpush2.bf16.msra.mxu0 0
    %1064 = vmatprep.subr.bf16.mxu0 0
    %1065 = vmatpush2.bf16.msra.mxu0 0
    %1066 = vmatprep.subr.bf16.mxu0 0
    %1067 = vmatpush2.bf16.msra.mxu0 0
    %1068 = vmatprep.mubr.bf16.mxu0 0
    %1069 = vmatmul.mubr.bf16.gmra.mxu0 %v987
    %v1070 = vpop.f32.mrf.mxu0
    %v1071 = vadd.f32 %v889, %v1070
    %v1072 = vpop.f32.mrf.mxu0
    %v1073 = vpop.f32.mrf.mxu0
    %v1074 = vpop.f32.mrf.mxu0
    %1075 = vdwg.mxu0
    %v1092 = vunpack.c.l.b16 %v862
    %v1093 = vunpack.c.l.b16 %v863
    %v1094 = vunpack.c.l.b16 %v864
    %v1095 = vunpack.c.l.b16 %v865
    %v1096 = vunpack.c.l.b16 %v866
    %v1097 = vunpack.c.l.b16 %v867
    %v1098 = vunpack.c.l.b16 %v868
    %v1099 = vunpack.c.l.b16 %v869
    %v1100 = vunpack.c.l.b16 %v870
    %v1101 = vunpack.c.l.b16 %v871
    %v1102 = vunpack.c.l.b16 %v872
    %v1103 = vunpack.c.l.b16 %v873
    %v1104 = vunpack.c.l.b16 %v874
    %v1105 = vunpack.c.l.b16 %v875
    %v1106 = vunpack.c.l.b16 %v876
    %v1107 = vunpack.c.l.b16 %v877
    %v1108 = vpack.c.b16 %v1093, %v1092
    %v1109 = vpack.c.b16 %v1095, %v1094
    %v1110 = vpack.c.b16 %v1097, %v1096
    %v1111 = vpack.c.b16 %v1099, %v1098
    %v1112 = vpack.c.b16 %v1101, %v1100
    %v1113 = vpack.c.b16 %v1103, %v1102
    %v1114 = vpack.c.b16 %v1105, %v1104
    %v1115 = vpack.c.b16 %v1107, %v1106
    %1124 = vmatprep.subr.bf16.mxu0 0
    %1125 = vmatpush1.bf16.msra.mxu0 %v1115
    %1126 = vmatprep.subr.bf16.mxu0 0
    %1127 = vmatpush1.bf16.msra.mxu0 %v1114
    %1128 = vmatprep.subr.bf16.mxu0 0
    %1129 = vmatpush1.bf16.msra.mxu0 %v1113
    %1130 = vmatprep.subr.bf16.mxu0 0
    %1131 = vmatpush1.bf16.msra.mxu0 %v1112
    %1132 = vmatprep.subr.bf16.mxu0 0
    %1133 = vmatpush1.bf16.msra.mxu0 %v1111
    %1134 = vmatprep.subr.bf16.mxu0 0
    %1135 = vmatpush1.bf16.msra.mxu0 %v1110
    %1136 = vmatprep.subr.bf16.mxu0 0
    %1137 = vmatpush1.bf16.msra.mxu0 %v1109
    %1138 = vmatprep.subr.bf16.mxu0 0
    %1139 = vmatpush1.bf16.msra.mxu0 %v1108
    %1140 = vmatprep.subr.bf16.mxu0 0
    %1141 = vmatpush2.bf16.msra.mxu0 0
    %1142 = vmatprep.subr.bf16.mxu0 0
    %1143 = vmatpush2.bf16.msra.mxu0 0
    %1144 = vmatprep.subr.bf16.mxu0 0
    %1145 = vmatpush2.bf16.msra.mxu0 0
    %1146 = vmatprep.subr.bf16.mxu0 0
    %1147 = vmatpush2.bf16.msra.mxu0 0
    %1148 = vmatprep.subr.bf16.mxu0 0
    %1149 = vmatpush2.bf16.msra.mxu0 0
    %1150 = vmatprep.subr.bf16.mxu0 0
    %1151 = vmatpush2.bf16.msra.mxu0 0
    %1152 = vmatprep.subr.bf16.mxu0 0
    %1153 = vmatpush2.bf16.msra.mxu0 0
    %1154 = vmatprep.subr.bf16.mxu0 0
    %1155 = vmatpush2.bf16.msra.mxu0 0
    %1156 = vmatprep.mubr.bf16.mxu0 0
    %1157 = vmatmul.mubr.bf16.gmra.mxu0 %v897
    %v1158 = vpop.f32.mrf.mxu0
    %v1159 = vadd.f32 %v895, %v1158
    %v1160 = vpop.f32.mrf.mxu0
    %v1161 = vpop.f32.mrf.mxu0
    %v1162 = vpop.f32.mrf.mxu0
    %1163 = vdwg.mxu0
    %v1164 = vadd.f32 %v1071, %v1159
    %1165 = vst [vmem:[#allocation17] sm:$0xff] %v1164
    // Predicated region
    $region106: #{tpu_custom_call.1} parent=1 // pred_check
      _
    $region107: #{tpu_custom_call.1} parent=1 // pred_check_branch
      %1167 = sbr.rel (0) target = $region109
    $region108: #{tpu_custom_call.1} parent=1 // pred_region
      %s1169 = ssub.s32 128, 128
      %1170 = vsyncadd [#allocation4], %s1169
      %s1172 = sshll.u32 [#allocation17], 4
      %s1173 = int_to_ptr.vmem [resolvable:$true] %s1172
      %1175 = dma.vmem_to_hbm [thread:$0]  %s1173, 128, %s17, [#allocation4]
    $region109: #{tpu_custom_call.1} parent=1 // pred_fallthru
      _
    // Predicated region
    $region110: #{tpu_custom_call.1} parent=1 // pred_check
      _
    $region111: #{tpu_custom_call.1} parent=1 // pred_check_branch
      %1177 = sbr.rel (0) target = $region113
    $region112: #{tpu_custom_call.1} parent=1 // pred_region
      %1178 = dma.done [#allocation4], 128
    $region113: #{tpu_custom_call.1} parent=1 // pred_fallthru
      _
    %1179 = vsyncpa [#allocation3], 1
    %1180 = vsyncpa [#allocation6], 1
    %1181 = vsyncpa [#allocation9], 1
    %1182 = vsyncpa [#allocation12], 1
    %1183 = vsyncpa [#allocation15], 1
    %1184 = vsyncpa [#allocation4], 1

</llo_original>
